<compile_context>
chip_gen: v5e
topology: v5e:2x2
jax: 0.10.0
libtpu: 0.0.40
codegen_flags: <defaults>
</compile_context>

<pallas_src>
import functools

import jax
import jax.numpy as jnp
from jax.experimental import pallas as pl
from jax.experimental.pallas import tpu as pltpu

IGNORE_LABEL = 255.0   # cfg.DATASET.IGNORE_LABEL
SPAGG_ALPHA = 0.5
NORM_EPS = 1e-12       # F.normalize eps
SCORE_EPS = 1e-10      # scoring eps
LOG_CLAMP = -100.0     # nn.BCELoss log clamp


def _assoc_loss_kernel(x1t_ref, x2_ref, x2t_ref, gt_ref, bce_ref, cnt_ref, *, alpha, spagg):
    f32 = jnp.float32
    bf16 = jnp.bfloat16

    x1t = x1t_ref[0].astype(f32)      # (L1, C)  query pixels as rows
    x2 = x2_ref[0].astype(f32)        # (C, L2)  reference pixels as columns
    gt = gt_ref[0]                    # (L1, 1)  float labels
    L1 = x1t.shape[0]
    C, L2 = x2.shape

    if spagg:
        x2t = x2t_ref[0].astype(f32)  # (L2, C)
        # L2-normalise every spatial position of x2 (same norms, two layouts).
        rn = jnp.sqrt(jnp.sum(x2t * x2t, axis=1, keepdims=True))            # (L2, 1)
        x2nt = (x2t / jnp.maximum(rn, NORM_EPS)).astype(bf16)                # (L2, C)
        cn = jnp.sqrt(jnp.sum(x2 * x2, axis=0, keepdims=True))               # (1, L2)
        x2nc = (x2 / jnp.maximum(cn, NORM_EPS)).astype(bf16)                 # (C, L2)
        # Self cosine similarity: standard (L2,C)@(C,L2) MXU matmul, bf16 in / f32 acc.
        sim_self = jnp.dot(x2nt, x2nc, preferred_element_type=f32)           # (L2, L2) symmetric
        # Column stats (== row stats by symmetry); fused one-pass unbiased variance.
        csum = jnp.sum(sim_self, axis=0, keepdims=True)
        csq = jnp.sum(sim_self * sim_self, axis=0, keepdims=True)
        cmean = csum * (1.0 / L2)
        cstd = jnp.sqrt(jnp.maximum(csq - csum * cmean, 0.0) * (1.0 / (L2 - 1))) + SCORE_EPS
        cmax = jnp.max(sim_self, axis=0, keepdims=True)
        # exp_t[i, j] = exp(z_self[j, i] - max_i z_self[j, i]) : the TRANSPOSED un-normalised
        # softmax numerator, built directly from the symmetric sim_self
        # (note (s - mean)/std - (max - mean)/std == (s - max)/std) -> no transpose, no
        # full-matrix normalisation pass.
        exp_t = jnp.exp((sim_self - cmax) * (1.0 / cstd))                    # (L2, L2)
        denom = jnp.sum(exp_t, axis=0, keepdims=True)                        # (1, L2)
        # agg[c, j] = sum_i x2[c, i] * softmax_self[j, i] == (x2 @ exp_t)[c, j] / denom[j]
        agg = jnp.dot(x2.astype(bf16), exp_t.astype(bf16),
                      preferred_element_type=f32) * (1.0 / denom)            # (C, L2)
        x2 = (1.0 - alpha) * x2 + alpha * agg

    # Cosine cross-correlation: standard (L1,C)@(C,L2) matmul, bf16 operands / f32 acc.
    n1 = jnp.sqrt(jnp.sum(x1t * x1t, axis=1, keepdims=True))                 # (L1, 1)
    x1n = (x1t / jnp.maximum(n1, NORM_EPS)).astype(bf16)                     # (L1, C)
    n2 = jnp.sqrt(jnp.sum(x2 * x2, axis=0, keepdims=True))                   # (1, L2)
    x2n = (x2 / jnp.maximum(n2, NORM_EPS)).astype(bf16)                      # (C, L2)
    sim12 = jnp.dot(x1n, x2n, preferred_element_type=f32)                    # (L1, L2)
    sq12 = sim12 * sim12                                                     # shared by both stats

    # scoring(sim_mat_12) along axis=1: never materialise the softmax matrix; only its
    # per-row max value (= 1 / denominator) and the argmax (taken on raw sim12) are needed.
    rsum = jnp.sum(sim12, axis=1, keepdims=True)
    rsq = jnp.sum(sq12, axis=1, keepdims=True)
    rmean = rsum * (1.0 / L2)
    rstd = jnp.sqrt(jnp.maximum(rsq - rsum * rmean, 0.0) * (1.0 / (L2 - 1))) + SCORE_EPS
    rmax = jnp.max(sim12, axis=1, keepdims=True)
    dr = jnp.sum(jnp.exp((sim12 - rmax) * (1.0 / rstd)), axis=1, keepdims=True)
    max12 = pl.reciprocal(dr, approx=True)                                   # (L1, 1)

    # scoring(sim_mat_21) along its axis=1  ==  column-wise scoring of sim12.
    csum = jnp.sum(sim12, axis=0, keepdims=True)
    csq = jnp.sum(sq12, axis=0, keepdims=True)
    cmean = csum * (1.0 / L1)
    cstd = jnp.sqrt(jnp.maximum(csq - csum * cmean, 0.0) * (1.0 / (L1 - 1))) + SCORE_EPS
    cmax = jnp.max(sim12, axis=0, keepdims=True)
    dc = jnp.sum(jnp.exp((sim12 - cmax) * (1.0 / cstd)), axis=0, keepdims=True)
    max21 = pl.reciprocal(dc, approx=True)                                   # (1, L2)

    # cycle_associate (asso_topk == 1): argmax one-hots as equality masks fused into
    # masked reductions (no iota / one-hot buffers). Assumes unique maxima, which holds
    # with probability one for continuous features (torch.topk would take the first index).
    ohr = sim12 == rmax            # (L1, L2) row-argmax mask
    ohc = sim12 == cmax            # (L1, L2) column-argmax mask

    reassoc = jnp.sum(jnp.where(ohr, max21, 0.0), axis=1, keepdims=True)     # (L1, 1)
    sim = max12 * reassoc

    # associate_gt: gt gathered through the cycle-back indices.
    gt_back = jnp.sum(jnp.where(ohc, gt, 0.0), axis=0, keepdims=True)        # (1, L2)
    gt_cycle = jnp.sum(jnp.where(ohr, gt_back, 0.0), axis=1, keepdims=True)  # (L1, 1)

    select = jnp.logical_and(gt == gt_cycle, gt != IGNORE_LABEL)
    # BCE(sim, 1.0) on selected entries with the nn.BCELoss log clamp.
    bce = jnp.where(select, -jnp.maximum(jnp.log(sim), LOG_CLAMP), 0.0)

    bce_ref[0] = jnp.sum(bce, axis=0, keepdims=True)                         # (1, 1)
    cnt_ref[0] = jnp.sum(select.astype(f32), axis=0, keepdims=True)          # (1, 1)


def association_loss(x1, x2, gt1, *, spagg=True, spagg_alpha=SPAGG_ALPHA):
    """x1, x2: NCHW features (f32 or bf16); gt1: (N, H, W) integer labels (255 = ignore)."""
    N, C, H, W = x1.shape
    N2, C2, H2, W2 = x2.shape
    assert N == N2 and C == C2
    L1, L2 = H * W, H2 * W2

    # Keep features in their incoming dtype (bf16 inputs halve HBM traffic); the kernel
    # upcasts to f32 only for the norm/scoring math and feeds bf16 operands to the MXU.
    x1t = jnp.transpose(x1.reshape(N, C, L1), (0, 2, 1))   # (N, L1, C)
    x2c = x2.reshape(N, C, L2)                              # (N, C, L2)
    x2t = jnp.transpose(x2c, (0, 2, 1))                     # (N, L2, C) lhs of self-sim matmul
    gtf = gt1.reshape(N, L1, 1).astype(jnp.float32)

    # Rough per-step VMEM budget (f32 temporaries + double-buffered inputs), clamped to a
    # range that is safe on v5e/v6e/v7x.
    # TODO(synk): for large L2 (v7x 64 MiB VMEM) restructure spagg / cross-correlation as a
    # row-blocked two-pass (online-softmax over L2 blocks) instead of full (L2,L2) tiles,
    # which would also expose a second parallel grid axis for the N=1 / odd-N megacore case.
    isz = jnp.dtype(x1.dtype).itemsize
    tmp_bytes = 4 * (2 * L2 * L2 + 4 * L1 * L2 + 6 * C * L2 + 4 * L1 * C)
    in_bytes = 2 * isz * (L1 * C + 2 * C * L2 + L1)
    vmem_limit = int(min(max(2 * (tmp_bytes + in_bytes), 32 * 1024 * 1024),
                         64 * 1024 * 1024))

    kernel = functools.partial(_assoc_loss_kernel, alpha=spagg_alpha, spagg=spagg)

    bce, cnt = pl.pallas_call(
        kernel,
        out_shape=(jax.ShapeDtypeStruct((N, 1, 1), jnp.float32),
                   jax.ShapeDtypeStruct((N, 1, 1), jnp.float32)),
        grid_spec=pltpu.PrefetchScalarGridSpec(
            num_scalar_prefetch=0,
            grid=(N,),
            in_specs=[pl.BlockSpec((1, L1, C), lambda n: (n, 0, 0)),
                      pl.BlockSpec((1, C, L2), lambda n: (n, 0, 0)),
                      pl.BlockSpec((1, L2, C), lambda n: (n, 0, 0)),
                      pl.BlockSpec((1, L1, 1), lambda n: (n, 0, 0))],
            out_specs=[pl.BlockSpec((1, 1, 1), lambda n: (n, 0, 0)),
                       pl.BlockSpec((1, 1, 1), lambda n: (n, 0, 0))]),
        compiler_params=pltpu.CompilerParams(
            dimension_semantics=("parallel",),
            vmem_limit_bytes=vmem_limit),
    )(x1t, x2c, x2t, gtf)

    total_cnt = jnp.sum(cnt)
    total_bce = jnp.sum(bce)
    # nn.BCELoss(reduction='mean') over all selected elements; 0.0 if none selected.
    loss_assoc = jnp.where(total_cnt > 0.0, total_bce / jnp.maximum(total_cnt, 1.0), 0.0)
    # TODO(synk): print_info diagnostics (cover_ratio / pos_ratio / correct_ratio) omitted.
    return {"association": loss_assoc}


def reference_association_loss(x1, x2, gt1, *, spagg=True, alpha=SPAGG_ALPHA):
    """Pure-JAX mirror of the PyTorch forward (same math / gather semantics).

    Matmul operands are rounded to bf16 at exactly the points the kernel rounds them, so
    the argmax decisions of the two implementations coincide and the comparison tests the
    association logic rather than bf16-vs-f32 MXU precision.
    """
    f32, bf16 = jnp.float32, jnp.bfloat16
    N, C, H, W = x1.shape
    _, _, H2, W2 = x2.shape
    L1, L2 = H * W, H2 * W2
    x1f = x1.reshape(N, C, L1).astype(f32)
    x2f = x2.reshape(N, C, L2).astype(f32)
    gt = gt1.reshape(N, L1).astype(f32)

    def norm_cols(x):
        n = jnp.sqrt(jnp.sum(x * x, axis=1, keepdims=True))
        return x / jnp.maximum(n, NORM_EPS)

    def std_unbiased(s, axis):
        n = s.shape[axis]
        mean = jnp.mean(s, axis=axis, keepdims=True)
        var = jnp.maximum(jnp.sum(s * s, axis=axis, keepdims=True) - n * mean * mean,
                          0.0) / (n - 1)
        return jnp.sqrt(var) + SCORE_EPS

    if spagg:
        x2n = norm_cols(x2f).astype(bf16)
        sim_self = jnp.einsum("nci,ncj->nij", x2n, x2n, preferred_element_type=f32)
        e_self = jnp.exp((sim_self - jnp.max(sim_self, axis=2, keepdims=True))
                         / std_unbiased(sim_self, axis=2))
        den = jnp.sum(e_self, axis=2, keepdims=True)                       # (N, L2, 1)
        agg = jnp.einsum("nci,nji->ncj", x2f.astype(bf16), e_self.astype(bf16),
                         preferred_element_type=f32) / jnp.swapaxes(den, 1, 2)
        x2f = (1.0 - alpha) * x2f + alpha * agg

    x1n = norm_cols(x1f).astype(bf16)
    x2n = norm_cols(x2f).astype(bf16)
    sim12 = jnp.einsum("nci,ncj->nij", x1n, x2n, preferred_element_type=f32)  # (N, L1, L2)

    def scoring(s):
        z = (s - jnp.mean(s, axis=-1, keepdims=True)) / std_unbiased(s, axis=-1)
        return jax.nn.softmax(z, axis=-1)

    s12 = scoring(sim12)
    s21 = scoring(jnp.swapaxes(sim12, 1, 2))
    mid_idx = jnp.argmax(s12, axis=2)
    assoc_sim = jnp.max(s12, axis=2)
    idx21 = jnp.argmax(s21, axis=2)
    max21 = jnp.max(s21, axis=2)
    reassoc = jnp.take_along_axis(max21, mid_idx, axis=1)
    final_idx = jnp.take_along_axis(idx21, mid_idx, axis=1)
    sim = assoc_sim * reassoc
    assoc_gt = jnp.take_along_axis(gt, final_idx, axis=1)
    select = (gt == assoc_gt) & (gt != IGNORE_LABEL)
    bce = jnp.where(select, -jnp.maximum(jnp.log(sim), LOG_CLAMP), 0.0)
    cnt = jnp.sum(select)
    return jnp.where(cnt > 0, jnp.sum(bce) / jnp.maximum(cnt, 1), 0.0)


if __name__ == "__main__":
    key = jax.random.PRNGKey(0)
    k1, k2, k3, k4 = jax.random.split(key, 4)

    N, C, H, W = 2, 8, 8, 8       # x1: L1 = 64
    H2, W2 = 8, 16                # x2: L2 = 128

    x1 = jax.random.normal(k1, (N, C, H, W), jnp.float32)
    x2 = jax.random.normal(k2, (N, C, H2, W2), jnp.float32)
    gt1 = jax.random.randint(k3, (N, H, W), 0, 5).astype(jnp.int32)
    ignore = jax.random.bernoulli(k4, 0.1, (N, H, W))
    gt1 = jnp.where(ignore, 255, gt1)

    loss = association_loss(x1, x2, gt1)
    loss_val = jax.block_until_ready(loss["association"])

    ref_val = jax.block_until_ready(reference_association_loss(x1, x2, gt1))
    assert jnp.allclose(loss_val, ref_val, rtol=2e-2, atol=1e-3), (loss_val, ref_val)

    print("KERNEL_OK")
</pallas_src>

<mosaic_0001>
module attributes {stable_mosaic.version = 11 : i64} {
  func.func @_assoc_loss_kernel(%arg0: i32, %arg1: memref<1x64x8xf32, #tpu.memory_space<vmem>>, %arg2: memref<1x8x128xf32, #tpu.memory_space<vmem>>, %arg3: memref<1x128x8xf32, #tpu.memory_space<vmem>>, %arg4: memref<1x64x1xf32, #tpu.memory_space<vmem>>, %arg5: memref<1x1x1xf32, #tpu.memory_space<vmem>>, %arg6: memref<1x1x1xf32, #tpu.memory_space<vmem>>) attributes {dimension_semantics = [#tpu.dimension_semantics<parallel>], iteration_bounds = array<i64: 2>, scalar_prefetch = 0 : i64, scratch_operands = 0 : i64, tpu.core_type = #tpu.core_type<tc>, window_params = [{transform_indices = @transform_0, window_bounds = array<i64: 1, 64, 8>}, {transform_indices = @transform_1, window_bounds = array<i64: 1, 8, 128>}, {transform_indices = @transform_2, window_bounds = array<i64: 1, 128, 8>}, {transform_indices = @transform_3, window_bounds = array<i64: 1, 64, 1>}, {transform_indices = @transform_4, window_bounds = array<i64: 1, 1, 1>}, {transform_indices = @transform_5, window_bounds = array<i64: 1, 1, 1>}]} {
    %c0 = arith.constant 0 : index
    %c0_0 = arith.constant 0 : index
    %c0_1 = arith.constant 0 : index
    %0 = vector.load %arg1[%c0, %c0_0, %c0_1] : memref<1x64x8xf32, #tpu.memory_space<vmem>>, vector<1x64x8xf32>
    %1 = vector.shape_cast %0 : vector<1x64x8xf32> to vector<64x8xf32>
    %c0_2 = arith.constant 0 : index
    %c0_3 = arith.constant 0 : index
    %c0_4 = arith.constant 0 : index
    %2 = vector.load %arg2[%c0_2, %c0_3, %c0_4] : memref<1x8x128xf32, #tpu.memory_space<vmem>>, vector<1x8x128xf32>
    %3 = vector.shape_cast %2 : vector<1x8x128xf32> to vector<8x128xf32>
    %c0_5 = arith.constant 0 : index
    %c0_6 = arith.constant 0 : index
    %c0_7 = arith.constant 0 : index
    %4 = vector.load %arg4[%c0_5, %c0_6, %c0_7] : memref<1x64x1xf32, #tpu.memory_space<vmem>>, vector<1x64x1xf32>
    %5 = vector.shape_cast %4 : vector<1x64x1xf32> to vector<64x1xf32>
    %c0_8 = arith.constant 0 : index
    %c0_9 = arith.constant 0 : index
    %c0_10 = arith.constant 0 : index
    %6 = vector.load %arg3[%c0_8, %c0_9, %c0_10] : memref<1x128x8xf32, #tpu.memory_space<vmem>>, vector<1x128x8xf32>
    %7 = vector.shape_cast %6 : vector<1x128x8xf32> to vector<128x8xf32>
    %8 = arith.mulf %7, %7 : vector<128x8xf32>
    %cst = arith.constant dense<0.000000e+00> : vector<128xf32>
    %9 = vector.multi_reduction <add>, %8, %cst [1] : vector<128x8xf32> to vector<128xf32>
    %10 = vector.shape_cast %9 : vector<128xf32> to vector<128x1xf32>
    %11 = math.sqrt %10 : vector<128x1xf32>
    %cst_11 = arith.constant 9.99999996E-13 : f32
    %12 = vector.broadcast %cst_11 : f32 to vector<128x1xf32>
    %13 = arith.maximumf %11, %12 : vector<128x1xf32>
    %14 = vector.broadcast %13 : vector<128x1xf32> to vector<128x8xf32>
    %15 = arith.divf %7, %14 : vector<128x8xf32>
    %16 = arith.truncf %15 : vector<128x8xf32> to vector<128x8xbf16>
    %17 = arith.mulf %3, %3 : vector<8x128xf32>
    %cst_12 = arith.constant dense<0.000000e+00> : vector<128xf32>
    %18 = vector.multi_reduction <add>, %17, %cst_12 [0] : vector<8x128xf32> to vector<128xf32>
    %19 = vector.shape_cast %18 : vector<128xf32> to vector<1x128xf32>
    %20 = math.sqrt %19 : vector<1x128xf32>
    %cst_13 = arith.constant 9.99999996E-13 : f32
    %21 = vector.broadcast %cst_13 : f32 to vector<1x128xf32>
    %22 = arith.maximumf %20, %21 : vector<1x128xf32>
    %23 = vector.broadcast %22 : vector<1x128xf32> to vector<8x128xf32>
    %24 = arith.divf %3, %23 : vector<8x128xf32>
    %25 = arith.truncf %24 : vector<8x128xf32> to vector<8x128xbf16>
    %cst_14 = arith.constant dense<0.000000e+00> : vector<128x128xf32>
    %26 = tpu.matmul %16, %25, %cst_14 {dimension_numbers = #tpu.dot_dimension_numbers<[1], [0], [0], [1], [0, 0, 1, 1], [], []>} : vector<128x8xbf16>, vector<8x128xbf16>, vector<128x128xf32> -> vector<128x128xf32>
    %cst_15 = arith.constant dense<0.000000e+00> : vector<128xf32>
    %27 = vector.multi_reduction <add>, %26, %cst_15 [0] : vector<128x128xf32> to vector<128xf32>
    %28 = vector.shape_cast %27 : vector<128xf32> to vector<1x128xf32>
    %29 = arith.mulf %26, %26 : vector<128x128xf32>
    %cst_16 = arith.constant dense<0.000000e+00> : vector<128xf32>
    %30 = vector.multi_reduction <add>, %29, %cst_16 [0] : vector<128x128xf32> to vector<128xf32>
    %31 = vector.shape_cast %30 : vector<128xf32> to vector<1x128xf32>
    %cst_17 = arith.constant 7.812500e-03 : f32
    %32 = vector.broadcast %cst_17 : f32 to vector<1x128xf32>
    %33 = arith.mulf %28, %32 : vector<1x128xf32>
    %34 = arith.mulf %28, %33 : vector<1x128xf32>
    %35 = arith.subf %31, %34 : vector<1x128xf32>
    %cst_18 = arith.constant 0.000000e+00 : f32
    %36 = vector.broadcast %cst_18 : f32 to vector<1x128xf32>
    %37 = arith.maximumf %35, %36 : vector<1x128xf32>
    %cst_19 = arith.constant 0.00787401571 : f32
    %38 = vector.broadcast %cst_19 : f32 to vector<1x128xf32>
    %39 = arith.mulf %37, %38 : vector<1x128xf32>
    %40 = math.sqrt %39 : vector<1x128xf32>
    %cst_20 = arith.constant 1.000000e-10 : f32
    %41 = vector.broadcast %cst_20 : f32 to vector<1x128xf32>
    %42 = arith.addf %40, %41 : vector<1x128xf32>
    %cst_21 = arith.constant dense<0xFF800000> : vector<128xf32>
    %43 = vector.multi_reduction <maximumf>, %26, %cst_21 [0] : vector<128x128xf32> to vector<128xf32>
    %44 = vector.shape_cast %43 : vector<128xf32> to vector<1x128xf32>
    %45 = vector.broadcast %44 : vector<1x128xf32> to vector<128x128xf32>
    %46 = arith.subf %26, %45 : vector<128x128xf32>
    %cst_22 = arith.constant 1.000000e+00 : f32
    %47 = vector.broadcast %cst_22 : f32 to vector<1x128xf32>
    %48 = arith.divf %47, %42 : vector<1x128xf32>
    %49 = vector.broadcast %48 : vector<1x128xf32> to vector<128x128xf32>
    %50 = arith.mulf %46, %49 : vector<128x128xf32>
    %51 = math.exp %50 : vector<128x128xf32>
    %cst_23 = arith.constant dense<0.000000e+00> : vector<128xf32>
    %52 = vector.multi_reduction <add>, %51, %cst_23 [0] : vector<128x128xf32> to vector<128xf32>
    %53 = vector.shape_cast %52 : vector<128xf32> to vector<1x128xf32>
    %54 = arith.truncf %3 : vector<8x128xf32> to vector<8x128xbf16>
    %55 = arith.truncf %51 : vector<128x128xf32> to vector<128x128xbf16>
    %cst_24 = arith.constant dense<0.000000e+00> : vector<8x128xf32>
    %56 = tpu.matmul %54, %55, %cst_24 {dimension_numbers = #tpu.dot_dimension_numbers<[1], [0], [0], [1], [0, 0, 1, 1], [], []>} : vector<8x128xbf16>, vector<128x128xbf16>, vector<8x128xf32> -> vector<8x128xf32>
    %cst_25 = arith.constant 1.000000e+00 : f32
    %57 = vector.broadcast %cst_25 : f32 to vector<1x128xf32>
    %58 = arith.divf %57, %53 : vector<1x128xf32>
    %59 = vector.broadcast %58 : vector<1x128xf32> to vector<8x128xf32>
    %60 = arith.mulf %56, %59 : vector<8x128xf32>
    %cst_26 = arith.constant 5.000000e-01 : f32
    %61 = vector.broadcast %cst_26 : f32 to vector<8x128xf32>
    %62 = arith.mulf %61, %3 : vector<8x128xf32>
    %cst_27 = arith.constant 5.000000e-01 : f32
    %63 = vector.broadcast %cst_27 : f32 to vector<8x128xf32>
    %64 = arith.mulf %63, %60 : vector<8x128xf32>
    %65 = arith.addf %62, %64 : vector<8x128xf32>
    %66 = arith.mulf %1, %1 : vector<64x8xf32>
    %cst_28 = arith.constant dense<0.000000e+00> : vector<64xf32>
    %67 = vector.multi_reduction <add>, %66, %cst_28 [1] : vector<64x8xf32> to vector<64xf32>
    %68 = vector.shape_cast %67 : vector<64xf32> to vector<64x1xf32>
    %69 = math.sqrt %68 : vector<64x1xf32>
    %cst_29 = arith.constant 9.99999996E-13 : f32
    %70 = vector.broadcast %cst_29 : f32 to vector<64x1xf32>
    %71 = arith.maximumf %69, %70 : vector<64x1xf32>
    %72 = vector.broadcast %71 : vector<64x1xf32> to vector<64x8xf32>
    %73 = arith.divf %1, %72 : vector<64x8xf32>
    %74 = arith.truncf %73 : vector<64x8xf32> to vector<64x8xbf16>
    %75 = arith.mulf %65, %65 : vector<8x128xf32>
    %cst_30 = arith.constant dense<0.000000e+00> : vector<128xf32>
    %76 = vector.multi_reduction <add>, %75, %cst_30 [0] : vector<8x128xf32> to vector<128xf32>
    %77 = vector.shape_cast %76 : vector<128xf32> to vector<1x128xf32>
    %78 = math.sqrt %77 : vector<1x128xf32>
    %cst_31 = arith.constant 9.99999996E-13 : f32
    %79 = vector.broadcast %cst_31 : f32 to vector<1x128xf32>
    %80 = arith.maximumf %78, %79 : vector<1x128xf32>
    %81 = vector.broadcast %80 : vector<1x128xf32> to vector<8x128xf32>
    %82 = arith.divf %65, %81 : vector<8x128xf32>
    %83 = arith.truncf %82 : vector<8x128xf32> to vector<8x128xbf16>
    %cst_32 = arith.constant dense<0.000000e+00> : vector<64x128xf32>
    %84 = tpu.matmul %74, %83, %cst_32 {dimension_numbers = #tpu.dot_dimension_numbers<[1], [0], [0], [1], [0, 0, 1, 1], [], []>} : vector<64x8xbf16>, vector<8x128xbf16>, vector<64x128xf32> -> vector<64x128xf32>
    %85 = arith.mulf %84, %84 : vector<64x128xf32>
    %cst_33 = arith.constant dense<0.000000e+00> : vector<64xf32>
    %86 = vector.multi_reduction <add>, %84, %cst_33 [1] : vector<64x128xf32> to vector<64xf32>
    %87 = vector.shape_cast %86 : vector<64xf32> to vector<64x1xf32>
    %cst_34 = arith.constant dense<0.000000e+00> : vector<64xf32>
    %88 = vector.multi_reduction <add>, %85, %cst_34 [1] : vector<64x128xf32> to vector<64xf32>
    %89 = vector.shape_cast %88 : vector<64xf32> to vector<64x1xf32>
    %cst_35 = arith.constant 7.812500e-03 : f32
    %90 = vector.broadcast %cst_35 : f32 to vector<64x1xf32>
    %91 = arith.mulf %87, %90 : vector<64x1xf32>
    %92 = arith.mulf %87, %91 : vector<64x1xf32>
    %93 = arith.subf %89, %92 : vector<64x1xf32>
    %cst_36 = arith.constant 0.000000e+00 : f32
    %94 = vector.broadcast %cst_36 : f32 to vector<64x1xf32>
    %95 = arith.maximumf %93, %94 : vector<64x1xf32>
    %cst_37 = arith.constant 0.00787401571 : f32
    %96 = vector.broadcast %cst_37 : f32 to vector<64x1xf32>
    %97 = arith.mulf %95, %96 : vector<64x1xf32>
    %98 = math.sqrt %97 : vector<64x1xf32>
    %cst_38 = arith.constant 1.000000e-10 : f32
    %99 = vector.broadcast %cst_38 : f32 to vector<64x1xf32>
    %100 = arith.addf %98, %99 : vector<64x1xf32>
    %cst_39 = arith.constant dense<0xFF800000> : vector<64xf32>
    %101 = vector.multi_reduction <maximumf>, %84, %cst_39 [1] : vector<64x128xf32> to vector<64xf32>
    %102 = vector.shape_cast %101 : vector<64xf32> to vector<64x1xf32>
    %103 = vector.broadcast %102 : vector<64x1xf32> to vector<64x128xf32>
    %104 = arith.subf %84, %103 : vector<64x128xf32>
    %cst_40 = arith.constant 1.000000e+00 : f32
    %105 = vector.broadcast %cst_40 : f32 to vector<64x1xf32>
    %106 = arith.divf %105, %100 : vector<64x1xf32>
    %107 = vector.broadcast %106 : vector<64x1xf32> to vector<64x128xf32>
    %108 = arith.mulf %104, %107 : vector<64x128xf32>
    %109 = math.exp %108 : vector<64x128xf32>
    %cst_41 = arith.constant dense<0.000000e+00> : vector<64xf32>
    %110 = vector.multi_reduction <add>, %109, %cst_41 [1] : vector<64x128xf32> to vector<64xf32>
    %111 = vector.shape_cast %110 : vector<64xf32> to vector<64x1xf32>
    %112 = tpu.reciprocal %111 {approx = true} : vector<64x1xf32> -> vector<64x1xf32>
    %cst_42 = arith.constant dense<0.000000e+00> : vector<128xf32>
    %113 = vector.multi_reduction <add>, %84, %cst_42 [0] : vector<64x128xf32> to vector<128xf32>
    %114 = vector.shape_cast %113 : vector<128xf32> to vector<1x128xf32>
    %cst_43 = arith.constant dense<0.000000e+00> : vector<128xf32>
    %115 = vector.multi_reduction <add>, %85, %cst_43 [0] : vector<64x128xf32> to vector<128xf32>
    %116 = vector.shape_cast %115 : vector<128xf32> to vector<1x128xf32>
    %cst_44 = arith.constant 1.562500e-02 : f32
    %117 = vector.broadcast %cst_44 : f32 to vector<1x128xf32>
    %118 = arith.mulf %114, %117 : vector<1x128xf32>
    %119 = arith.mulf %114, %118 : vector<1x128xf32>
    %120 = arith.subf %116, %119 : vector<1x128xf32>
    %cst_45 = arith.constant 0.000000e+00 : f32
    %121 = vector.broadcast %cst_45 : f32 to vector<1x128xf32>
    %122 = arith.maximumf %120, %121 : vector<1x128xf32>
    %cst_46 = arith.constant 0.0158730168 : f32
    %123 = vector.broadcast %cst_46 : f32 to vector<1x128xf32>
    %124 = arith.mulf %122, %123 : vector<1x128xf32>
    %125 = math.sqrt %124 : vector<1x128xf32>
    %cst_47 = arith.constant 1.000000e-10 : f32
    %126 = vector.broadcast %cst_47 : f32 to vector<1x128xf32>
    %127 = arith.addf %125, %126 : vector<1x128xf32>
    %cst_48 = arith.constant dense<0xFF800000> : vector<128xf32>
    %128 = vector.multi_reduction <maximumf>, %84, %cst_48 [0] : vector<64x128xf32> to vector<128xf32>
    %129 = vector.shape_cast %128 : vector<128xf32> to vector<1x128xf32>
    %130 = vector.broadcast %129 : vector<1x128xf32> to vector<64x128xf32>
    %131 = arith.subf %84, %130 : vector<64x128xf32>
    %cst_49 = arith.constant 1.000000e+00 : f32
    %132 = vector.broadcast %cst_49 : f32 to vector<1x128xf32>
    %133 = arith.divf %132, %127 : vector<1x128xf32>
    %134 = vector.broadcast %133 : vector<1x128xf32> to vector<64x128xf32>
    %135 = arith.mulf %131, %134 : vector<64x128xf32>
    %136 = math.exp %135 : vector<64x128xf32>
    %cst_50 = arith.constant dense<0.000000e+00> : vector<128xf32>
    %137 = vector.multi_reduction <add>, %136, %cst_50 [0] : vector<64x128xf32> to vector<128xf32>
    %138 = vector.shape_cast %137 : vector<128xf32> to vector<1x128xf32>
    %139 = tpu.reciprocal %138 {approx = true} : vector<1x128xf32> -> vector<1x128xf32>
    %140 = vector.broadcast %102 : vector<64x1xf32> to vector<64x128xf32>
    %141 = arith.cmpf oeq, %84, %140 : vector<64x128xf32>
    %142 = vector.broadcast %129 : vector<1x128xf32> to vector<64x128xf32>
    %143 = arith.cmpf oeq, %84, %142 : vector<64x128xf32>
    %cst_51 = arith.constant 0.000000e+00 : f32
    %144 = vector.shape_cast %139 : vector<1x128xf32> to vector<1x128xf32>
    %145 = vector.broadcast %144 : vector<1x128xf32> to vector<64x128xf32>
    %146 = vector.broadcast %cst_51 : f32 to vector<64x128xf32>
    %147 = arith.select %141, %145, %146 : vector<64x128xi1>, vector<64x128xf32>
    %cst_52 = arith.constant dense<0.000000e+00> : vector<64xf32>
    %148 = vector.multi_reduction <add>, %147, %cst_52 [1] : vector<64x128xf32> to vector<64xf32>
    %149 = vector.shape_cast %148 : vector<64xf32> to vector<64x1xf32>
    %150 = arith.mulf %112, %149 : vector<64x1xf32>
    %cst_53 = arith.constant 0.000000e+00 : f32
    %151 = vector.shape_cast %5 : vector<64x1xf32> to vector<64x1xf32>
    %152 = vector.broadcast %151 : vector<64x1xf32> to vector<64x128xf32>
    %153 = vector.broadcast %cst_53 : f32 to vector<64x128xf32>
    %154 = arith.select %143, %152, %153 : vector<64x128xi1>, vector<64x128xf32>
    %cst_54 = arith.constant dense<0.000000e+00> : vector<128xf32>
    %155 = vector.multi_reduction <add>, %154, %cst_54 [0] : vector<64x128xf32> to vector<128xf32>
    %156 = vector.shape_cast %155 : vector<128xf32> to vector<1x128xf32>
    %cst_55 = arith.constant 0.000000e+00 : f32
    %157 = vector.shape_cast %156 : vector<1x128xf32> to vector<1x128xf32>
    %158 = vector.broadcast %157 : vector<1x128xf32> to vector<64x128xf32>
    %159 = vector.broadcast %cst_55 : f32 to vector<64x128xf32>
    %160 = arith.select %141, %158, %159 : vector<64x128xi1>, vector<64x128xf32>
    %cst_56 = arith.constant dense<0.000000e+00> : vector<64xf32>
    %161 = vector.multi_reduction <add>, %160, %cst_56 [1] : vector<64x128xf32> to vector<64xf32>
    %162 = vector.shape_cast %161 : vector<64xf32> to vector<64x1xf32>
    %163 = arith.cmpf oeq, %5, %162 : vector<64x1xf32>
    %cst_57 = arith.constant 2.550000e+02 : f32
    %164 = vector.broadcast %cst_57 : f32 to vector<64x1xf32>
    %165 = arith.cmpf one, %5, %164 : vector<64x1xf32>
    %166 = arith.andi %163, %165 : vector<64x1xi1>
    %167 = math.log %150 : vector<64x1xf32>
    %cst_58 = arith.constant -1.000000e+02 : f32
    %168 = vector.broadcast %cst_58 : f32 to vector<64x1xf32>
    %169 = arith.maximumf %167, %168 : vector<64x1xf32>
    %cst_59 = arith.constant 0.000000e+00 : f32
    %170 = vector.broadcast %cst_59 : f32 to vector<64x1xf32>
    %171 = arith.subf %170, %169 : vector<64x1xf32>
    %cst_60 = arith.constant 0.000000e+00 : f32
    %172 = vector.broadcast %cst_60 : f32 to vector<64x1xf32>
    %173 = arith.select %166, %171, %172 : vector<64x1xi1>, vector<64x1xf32>
    %cst_61 = arith.constant dense<0.000000e+00> : vector<1xf32>
    %174 = vector.multi_reduction <add>, %173, %cst_61 [0] : vector<64x1xf32> to vector<1xf32>
    %175 = vector.shape_cast %174 : vector<1xf32> to vector<1x1xf32>
    %c0_62 = arith.constant 0 : index
    %c0_63 = arith.constant 0 : index
    %c0_64 = arith.constant 0 : index
    %176 = vector.load %arg5[%c0_62, %c0_63, %c0_64] : memref<1x1x1xf32, #tpu.memory_space<vmem>>, vector<1x1x1xf32>
    %177 = vector.shape_cast %176 : vector<1x1x1xf32> to vector<1x1xf32>
    %178 = vector.shape_cast %175 : vector<1x1xf32> to vector<1x1x1xf32>
    tpu.vector_store %arg5[%c0_62, %c0_63, %c0_64], %178 {strides = array<i32>} : memref<1x1x1xf32, #tpu.memory_space<vmem>>, vector<1x1x1xf32>,
    %179 = arith.extui %166 : vector<64x1xi1> to vector<64x1xi32>
    %180 = arith.sitofp %179 : vector<64x1xi32> to vector<64x1xf32>
    %cst_65 = arith.constant dense<0.000000e+00> : vector<1xf32>
    %181 = vector.multi_reduction <add>, %180, %cst_65 [0] : vector<64x1xf32> to vector<1xf32>
    %182 = vector.shape_cast %181 : vector<1xf32> to vector<1x1xf32>
    %c0_66 = arith.constant 0 : index
    %c0_67 = arith.constant 0 : index
    %c0_68 = arith.constant 0 : index
    %183 = vector.load %arg6[%c0_66, %c0_67, %c0_68] : memref<1x1x1xf32, #tpu.memory_space<vmem>>, vector<1x1x1xf32>
    %184 = vector.shape_cast %183 : vector<1x1x1xf32> to vector<1x1xf32>
    %185 = vector.shape_cast %182 : vector<1x1xf32> to vector<1x1x1xf32>
    tpu.vector_store %arg6[%c0_66, %c0_67, %c0_68], %185 {strides = array<i32>} : memref<1x1x1xf32, #tpu.memory_space<vmem>>, vector<1x1x1xf32>,
    return
  }
  func.func @transform_0(%arg0: i32) -> (i32, i32, i32) {
    %c0_i32 = arith.constant 0 : i32
    %c0_i32_0 = arith.constant 0 : i32
    %c0_i32_1 = arith.constant 0 : i32
    return %arg0, %c0_i32, %c0_i32_0 : i32, i32, i32
  }
  func.func @transform_1(%arg0: i32) -> (i32, i32, i32) {
    %c0_i32 = arith.constant 0 : i32
    %c0_i32_0 = arith.constant 0 : i32
    %c0_i32_1 = arith.constant 0 : i32
    return %arg0, %c0_i32, %c0_i32_0 : i32, i32, i32
  }
  func.func @transform_2(%arg0: i32) -> (i32, i32, i32) {
    %c0_i32 = arith.constant 0 : i32
    %c0_i32_0 = arith.constant 0 : i32
    %c0_i32_1 = arith.constant 0 : i32
    return %arg0, %c0_i32, %c0_i32_0 : i32, i32, i32
  }
  func.func @transform_3(%arg0: i32) -> (i32, i32, i32) {
    %c0_i32 = arith.constant 0 : i32
    %c0_i32_0 = arith.constant 0 : i32
    %c0_i32_1 = arith.constant 0 : i32
    return %arg0, %c0_i32, %c0_i32_0 : i32, i32, i32
  }
  func.func @transform_4(%arg0: i32) -> (i32, i32, i32) {
    %c0_i32 = arith.constant 0 : i32
    %c0_i32_0 = arith.constant 0 : i32
    %c0_i32_1 = arith.constant 0 : i32
    return %arg0, %c0_i32, %c0_i32_0 : i32, i32, i32
  }
  func.func @transform_5(%arg0: i32) -> (i32, i32, i32) {
    %c0_i32 = arith.constant 0 : i32
    %c0_i32_0 = arith.constant 0 : i32
    %c0_i32_1 = arith.constant 0 : i32
    return %arg0, %c0_i32, %c0_i32_0 : i32, i32, i32
  }
}

</mosaic_0001>

<llo_original>
// kernel: tpu_custom_call.1
$region0: #{tpu_custom_call.1}
  #allocation0 [shape = 'u32[]', space=smem, size = 0x4, offset = 0x4, fixed_abs, tag = 'smem constant byte address 0x4 - core index']
  #allocation1 [shape = 'u32[72,128]{1,0:T(1,128)}', space=vmem, size = 0x9000, scoped, tag = 'internal scratch']
  %s0 = inlined_call_operand.vmem [shape: f32[2,64,8], index: 0, kind: input, shape index: {}]
  %s1 = inlined_call_operand.vmem [shape: f32[2,8,128], index: 1, kind: input, shape index: {}]
  %s2 = inlined_call_operand.vmem [shape: f32[2,128,8], index: 2, kind: input, shape index: {}]
  %s3 = inlined_call_operand.vmem [shape: f32[2,64,1], index: 3, kind: input, shape index: {}]
  %s4 = inlined_call_operand.vmem [shape: f32[2,1,1], index: 4, kind: output, shape index: {0}]
  %s5 = inlined_call_operand.vmem [shape: f32[2,1,1], index: 5, kind: output, shape index: {1}]
  %6 = xla_tuple %s4, %s5
  %s7 = sld [smem:[#allocation0]]
  $region57: #{tpu_custom_call.1} parent=0
    _
  %s9 = ssub.s32 1, %s7
  %s10 = scalar_select 0, %s9, %s7
  loop: start=0, step=1, limit=4
  $region2: #{tpu_custom_call.1} parent=0 // loop_pre_header
    _
  $region3: #{tpu_custom_call.1} parent=0 // loop_header
    %s12 = sphi 0, %s16
    %p13 = scmp.ge.s32.totalorder %s12, 4
    %s22 = sphi 0, %s24
    %s25 = sphi 0, %s22
    %s26 = sphi 0, %s25
    %s42 = sphi 0, %s26
    %s48 = sphi 0, %s50
    %s51 = sphi 0, %s48
    %s52 = sphi 0, %s51
    %s68 = sphi 0, %s52
    %s74 = sphi 0, %s76
    %s77 = sphi 0, %s74
    %s78 = sphi 0, %s77
    %s94 = sphi 0, %s78
    %s100 = sphi 0, %s102
    %s103 = sphi 0, %s100
    %s104 = sphi 0, %s103
    %s120 = sphi 0, %s104
    %s126 = sphi 0, %s128
    %s129 = sphi 0, %s126
    %s130 = sphi 0, %s129
    %s146 = sphi 0, %s130
    %s152 = sphi 0, %s154
    %s155 = sphi 0, %s152
    %s156 = sphi 0, %s155
    %s172 = sphi 0, %s156
  $region4: #{tpu_custom_call.1} parent=0 // loop_header_branch
    %15 = sbr.rel (%p13) target = $region8
  $region5: #{tpu_custom_call.1} parent=0 // loop_body
    %s17 = ssub.s32 %s12, 1
    %s18 = ssub.s32 %s12, 2
    %s19 = sadd.s32 %s12, 1
    %s20 = ssub.s32 %s12, %s19
    %p21 = scmp.eq.s32.totalorder %s20, 0
    %s23 = sadd.s32 %s22, 1
    %s24 = scalar_select %p21, %s22, %s23
    %p27 = pneg %p21
    %p28 = scmp.eq.s32.totalorder %s12, 1
    %p29 = por %p27, %p28
    %p30 = scmp.ne.s32.totalorder %s22, %s25
    %p31 = scmp.eq.s32.totalorder %s12, 0
    %p32 = por %p30, %p31
    %p33 = scmp.ne.s32.totalorder %s22, %s25
    %p34 = scmp.eq.s32.totalorder %s17, 1
    %p35 = por %p33, %p34
    %p36 = scmp.ne.s32.totalorder %s25, %s26
    %p37 = scmp.eq.s32.totalorder %s17, 0
    %p38 = por %p36, %p37
    %p39 = scmp.ne.s32.totalorder %s25, %s26
    %p40 = scmp.eq.s32.totalorder %s18, 1
    %p41 = por %p39, %p40
    %p43 = scmp.ne.s32.totalorder %s26, %s42
    %p44 = scmp.eq.s32.totalorder %s18, 0
    %p45 = por %p43, %p44
    %s46 = ssub.s32 %s12, %s19
    %p47 = scmp.eq.s32.totalorder %s46, 0
    %s49 = sadd.s32 %s48, 1
    %s50 = scalar_select %p47, %s48, %s49
    %p53 = pneg %p47
    %p54 = scmp.eq.s32.totalorder %s12, 1
    %p55 = por %p53, %p54
    %p56 = scmp.ne.s32.totalorder %s48, %s51
    %p57 = scmp.eq.s32.totalorder %s12, 0
    %p58 = por %p56, %p57
    %p59 = scmp.ne.s32.totalorder %s48, %s51
    %p60 = scmp.eq.s32.totalorder %s17, 1
    %p61 = por %p59, %p60
    %p62 = scmp.ne.s32.totalorder %s51, %s52
    %p63 = scmp.eq.s32.totalorder %s17, 0
    %p64 = por %p62, %p63
    %p65 = scmp.ne.s32.totalorder %s51, %s52
    %p66 = scmp.eq.s32.totalorder %s18, 1
    %p67 = por %p65, %p66
    %p69 = scmp.ne.s32.totalorder %s52, %s68
    %p70 = scmp.eq.s32.totalorder %s18, 0
    %p71 = por %p69, %p70
    %s72 = ssub.s32 %s12, %s19
    %p73 = scmp.eq.s32.totalorder %s72, 0
    %s75 = sadd.s32 %s74, 1
    %s76 = scalar_select %p73, %s74, %s75
    %p79 = pneg %p73
    %p80 = scmp.eq.s32.totalorder %s12, 1
    %p81 = por %p79, %p80
    %p82 = scmp.ne.s32.totalorder %s74, %s77
    %p83 = scmp.eq.s32.totalorder %s12, 0
    %p84 = por %p82, %p83
    %p85 = scmp.ne.s32.totalorder %s74, %s77
    %p86 = scmp.eq.s32.totalorder %s17, 1
    %p87 = por %p85, %p86
    %p88 = scmp.ne.s32.totalorder %s77, %s78
    %p89 = scmp.eq.s32.totalorder %s17, 0
    %p90 = por %p88, %p89
    %p91 = scmp.ne.s32.totalorder %s77, %s78
    %p92 = scmp.eq.s32.totalorder %s18, 1
    %p93 = por %p91, %p92
    %p95 = scmp.ne.s32.totalorder %s78, %s94
    %p96 = scmp.eq.s32.totalorder %s18, 0
    %p97 = por %p95, %p96
    %s98 = ssub.s32 %s12, %s19
    %p99 = scmp.eq.s32.totalorder %s98, 0
    %s101 = sadd.s32 %s100, 1
    %s102 = scalar_select %p99, %s100, %s101
    %p105 = pneg %p99
    %p106 = scmp.eq.s32.totalorder %s12, 1
    %p107 = por %p105, %p106
    %p108 = scmp.ne.s32.totalorder %s100, %s103
    %p109 = scmp.eq.s32.totalorder %s12, 0
    %p110 = por %p108, %p109
    %p111 = scmp.ne.s32.totalorder %s100, %s103
    %p112 = scmp.eq.s32.totalorder %s17, 1
    %p113 = por %p111, %p112
    %p114 = scmp.ne.s32.totalorder %s103, %s104
    %p115 = scmp.eq.s32.totalorder %s17, 0
    %p116 = por %p114, %p115
    %p117 = scmp.ne.s32.totalorder %s103, %s104
    %p118 = scmp.eq.s32.totalorder %s18, 1
    %p119 = por %p117, %p118
    %p121 = scmp.ne.s32.totalorder %s104, %s120
    %p122 = scmp.eq.s32.totalorder %s18, 0
    %p123 = por %p121, %p122
    %s124 = ssub.s32 %s12, %s19
    %p125 = scmp.eq.s32.totalorder %s124, 0
    %s127 = sadd.s32 %s126, 1
    %s128 = scalar_select %p125, %s126, %s127
    %p131 = pneg %p125
    %p132 = scmp.eq.s32.totalorder %s12, 1
    %p133 = por %p131, %p132
    %p134 = scmp.ne.s32.totalorder %s126, %s129
    %p135 = scmp.eq.s32.totalorder %s12, 0
    %p136 = por %p134, %p135
    %p137 = scmp.ne.s32.totalorder %s126, %s129
    %p138 = scmp.eq.s32.totalorder %s17, 1
    %p139 = por %p137, %p138
    %p140 = scmp.ne.s32.totalorder %s129, %s130
    %p141 = scmp.eq.s32.totalorder %s17, 0
    %p142 = por %p140, %p141
    %p143 = scmp.ne.s32.totalorder %s129, %s130
    %p144 = scmp.eq.s32.totalorder %s18, 1
    %p145 = por %p143, %p144
    %p147 = scmp.ne.s32.totalorder %s130, %s146
    %p148 = scmp.eq.s32.totalorder %s18, 0
    %p149 = por %p147, %p148
    %s150 = ssub.s32 %s12, %s19
    %p151 = scmp.eq.s32.totalorder %s150, 0
    %s153 = sadd.s32 %s152, 1
    %s154 = scalar_select %p151, %s152, %s153
    %p157 = pneg %p151
    %p158 = scmp.eq.s32.totalorder %s12, 1
    %p159 = por %p157, %p158
    %p160 = scmp.ne.s32.totalorder %s152, %s155
    %p161 = scmp.eq.s32.totalorder %s12, 0
    %p162 = por %p160, %p161
    %p163 = scmp.ne.s32.totalorder %s152, %s155
    %p164 = scmp.eq.s32.totalorder %s17, 1
    %p165 = por %p163, %p164
    %p166 = scmp.ne.s32.totalorder %s155, %s156
    %p167 = scmp.eq.s32.totalorder %s17, 0
    %p168 = por %p166, %p167
    %p169 = scmp.ne.s32.totalorder %s155, %s156
    %p170 = scmp.eq.s32.totalorder %s18, 1
    %p171 = por %p169, %p170
    %p173 = scmp.ne.s32.totalorder %s156, %s172
    %p174 = scmp.eq.s32.totalorder %s18, 0
    %p175 = por %p173, %p174
    %p176 = scmp.le.s32.totalorder 1, %s12
    %p177 = scmp.lt.s32.totalorder %s12, 3
    %p178 = pnand %p176, %p177
    %p179 = pneg %p178
    // Predicated region
    $region9: #{tpu_custom_call.1} parent=5 // pred_check
      _
    $region10: #{tpu_custom_call.1} parent=5 // pred_check_branch
      %181 = sbr.rel (%p178) target = $region12
    $region11: #{tpu_custom_call.1} parent=5 // pred_region
      %s182 = ssub.s32 %s12, 1
    $region12: #{tpu_custom_call.1} parent=5 // pred_fallthru
      _
    %p183 = scmp.lt.s32.totalorder %s12, 2
    // Predicated region
    $region13: #{tpu_custom_call.1} parent=5 // pred_check
      %p184 = pneg %p183
    $region14: #{tpu_custom_call.1} parent=5 // pred_check_branch
      %186 = sbr.rel (%p184) target = $region16
    $region15: #{tpu_custom_call.1} parent=5 // pred_region
      // Predicated region
      $region17: #{tpu_custom_call.1} parent=15 // pred_check
        %p187 = pneg %p32
      $region18: #{tpu_custom_call.1} parent=15 // pred_check_branch
        %189 = sbr.rel (%p187) target = $region20
      $region19: #{tpu_custom_call.1} parent=15 // pred_region
        %p190 = scmp.lt.s32.totalorder %s12, 1
        %s191 = scalar_select %p190, %s12, 1
        %s192 = smul.addr %s191, 8
        %s193 = smul.addr %s192, 8
        %s194 = scalar_lea.vmem %s0, %s193
      $region20: #{tpu_custom_call.1} parent=15 // pred_fallthru
        _
      // Predicated region
      $region21: #{tpu_custom_call.1} parent=15 // pred_check
        %p195 = pneg %p58
      $region22: #{tpu_custom_call.1} parent=15 // pred_check_branch
        %197 = sbr.rel (%p195) target = $region24
      $region23: #{tpu_custom_call.1} parent=15 // pred_region
        %p198 = scmp.lt.s32.totalorder %s12, 1
        %s199 = scalar_select %p198, %s12, 1
        %s200 = smul.addr %s199, 8
        %s201 = scalar_lea.vmem %s1, %s200
      $region24: #{tpu_custom_call.1} parent=15 // pred_fallthru
        _
      // Predicated region
      $region25: #{tpu_custom_call.1} parent=15 // pred_check
        %p202 = pneg %p84
      $region26: #{tpu_custom_call.1} parent=15 // pred_check_branch
        %204 = sbr.rel (%p202) target = $region28
      $region27: #{tpu_custom_call.1} parent=15 // pred_region
        %p205 = scmp.lt.s32.totalorder %s12, 1
        %s206 = scalar_select %p205, %s12, 1
        %s207 = smul.addr %s206, 16
        %s208 = smul.addr %s207, 8
        %s209 = scalar_lea.vmem %s2, %s208
      $region28: #{tpu_custom_call.1} parent=15 // pred_fallthru
        _
      // Predicated region
      $region29: #{tpu_custom_call.1} parent=15 // pred_check
        %p210 = pneg %p110
      $region30: #{tpu_custom_call.1} parent=15 // pred_check_branch
        %212 = sbr.rel (%p210) target = $region32
      $region31: #{tpu_custom_call.1} parent=15 // pred_region
        %p213 = scmp.lt.s32.totalorder %s12, 1
        %s214 = scalar_select %p213, %s12, 1
        %s215 = smul.addr %s214, 8
        %s216 = smul.addr %s215, 8
        %s217 = scalar_lea.vmem %s3, %s216
      $region32: #{tpu_custom_call.1} parent=15 // pred_fallthru
        _
    $region16: #{tpu_custom_call.1} parent=5 // pred_fallthru
      _
    %p218 = scmp.le.s32.totalorder 1, %s12
    %p219 = scmp.lt.s32.totalorder %s12, 3
    %p220 = pnand %p218, %p219
    %p221 = pneg %p220
    // Predicated region
    $region33: #{tpu_custom_call.1} parent=5 // pred_check
      _
    $region34: #{tpu_custom_call.1} parent=5 // pred_check_branch
      %223 = sbr.rel (%p220) target = $region36
    $region35: #{tpu_custom_call.1} parent=5 // pred_region
      %s224 = ssub.s32 %s12, 1
      %p225 = scmp.lt.s32.totalorder %s17, 1
      %s226 = scalar_select %p225, %s17, 1
      %s227 = smul.addr %s226, 8
      %s228 = smul.addr %s227, 8
      %s229 = scalar_lea.vmem %s0, %s228
      %p230 = pneg %p38
      %p231 = pneg %p35
      %p232 = scmp.lt.s32.totalorder %s17, 1
      %s233 = scalar_select %p232, %s17, 1
      %s234 = smul.addr %s233, 8
      %s235 = scalar_lea.vmem %s1, %s234
      %p236 = pneg %p64
      %p237 = pneg %p61
      %p238 = scmp.lt.s32.totalorder %s17, 1
      %s239 = scalar_select %p238, %s17, 1
      %s240 = smul.addr %s239, 16
      %s241 = smul.addr %s240, 8
      %s242 = scalar_lea.vmem %s2, %s241
      %p243 = pneg %p90
      %p244 = pneg %p87
      %p245 = scmp.lt.s32.totalorder %s17, 1
      %s246 = scalar_select %p245, %s17, 1
      %s247 = smul.addr %s246, 8
      %s248 = smul.addr %s247, 8
      %s249 = scalar_lea.vmem %s3, %s248
      %p250 = pneg %p116
      %p251 = pneg %p113
      %p252 = pneg %p142
      %p253 = pneg %p139
      %p254 = scmp.lt.s32.totalorder %s17, 1
      %s255 = scalar_select %p254, %s17, 1
      %s256 = scalar_lea.vmem %s4, %s255
      %p257 = pneg %p168
      %p258 = pneg %p165
      %p259 = scmp.lt.s32.totalorder %s17, 1
      %s260 = scalar_select %p259, %s17, 1
      %s261 = scalar_lea.vmem %s5, %s260
      %p262 = scmp.lt.s32.totalorder %s17, 1
      %s263 = scalar_select %p262, %s17, 1
      %s264 = smul.addr %s263, 8
      %s265 = smul.addr %s264, 8
      %s266 = scalar_lea.vmem %s0, %s265
      %p267 = scmp.lt.s32.totalorder %s17, 1
      %s268 = scalar_select %p267, %s17, 1
      %s269 = smul.addr %s268, 8
      %s270 = scalar_lea.vmem %s1, %s269
      %p271 = scmp.lt.s32.totalorder %s17, 1
      %s272 = scalar_select %p271, %s17, 1
      %s273 = smul.addr %s272, 16
      %s274 = smul.addr %s273, 8
      %s275 = scalar_lea.vmem %s2, %s274
      %p276 = scmp.lt.s32.totalorder %s17, 1
      %s277 = scalar_select %p276, %s17, 1
      %s278 = smul.addr %s277, 8
      %s279 = smul.addr %s278, 8
      %s280 = scalar_lea.vmem %s3, %s279
      %p281 = scmp.lt.s32.totalorder %s17, 1
      %s282 = scalar_select %p281, %s17, 1
      %s283 = scalar_lea.vmem %s4, %s282
      %p284 = scmp.lt.s32.totalorder %s17, 1
      %s285 = scalar_select %p284, %s17, 1
      %s286 = scalar_lea.vmem %s5, %s285
      %v288 = vld [vmem:[%s266] sm:$0xff]
      %v289 = vld [vmem:[%s266 + $0x8] sm:$0xff]
      %v290 = vld [vmem:[%s266 + $0x10] sm:$0xff]
      %v291 = vld [vmem:[%s266 + $0x18] sm:$0xff]
      %v292 = vld [vmem:[%s266 + $0x20] sm:$0xff]
      %v293 = vld [vmem:[%s266 + $0x28] sm:$0xff]
      %v294 = vld [vmem:[%s266 + $0x30] sm:$0xff]
      %v295 = vld [vmem:[%s266 + $0x38] sm:$0xff]
      %v296 = vld [vmem:[%s270] sm:$0xff]
      %v297 = vld [vmem:[%s280] sm:$0xff]
      %v298 = vld [vmem:[%s280 + $0x8] sm:$0xff]
      %v299 = vld [vmem:[%s280 + $0x10] sm:$0xff]
      %v300 = vld [vmem:[%s280 + $0x18] sm:$0xff]
      %v301 = vld [vmem:[%s280 + $0x20] sm:$0xff]
      %v302 = vld [vmem:[%s280 + $0x28] sm:$0xff]
      %v303 = vld [vmem:[%s280 + $0x30] sm:$0xff]
      %v304 = vld [vmem:[%s280 + $0x38] sm:$0xff]
      %v305 = vld [vmem:[%s275] sm:$0xff]
      %v306 = vld [vmem:[%s275 + $0x8] sm:$0xff]
      %v307 = vld [vmem:[%s275 + $0x10] sm:$0xff]
      %v308 = vld [vmem:[%s275 + $0x18] sm:$0xff]
      %v309 = vld [vmem:[%s275 + $0x20] sm:$0xff]
      %v310 = vld [vmem:[%s275 + $0x28] sm:$0xff]
      %v311 = vld [vmem:[%s275 + $0x30] sm:$0xff]
      %v312 = vld [vmem:[%s275 + $0x38] sm:$0xff]
      %v313 = vld [vmem:[%s275 + $0x40] sm:$0xff]
      %v314 = vld [vmem:[%s275 + $0x48] sm:$0xff]
      %v315 = vld [vmem:[%s275 + $0x50] sm:$0xff]
      %v316 = vld [vmem:[%s275 + $0x58] sm:$0xff]
      %v317 = vld [vmem:[%s275 + $0x60] sm:$0xff]
      %v318 = vld [vmem:[%s275 + $0x68] sm:$0xff]
      %v319 = vld [vmem:[%s275 + $0x70] sm:$0xff]
      %v320 = vld [vmem:[%s275 + $0x78] sm:$0xff]
      %v321 = vmul.f32 %v305, %v305
      %v322 = vmul.f32 %v306, %v306
      %v323 = vmul.f32 %v307, %v307
      %v324 = vmul.f32 %v308, %v308
      %v325 = vmul.f32 %v309, %v309
      %v326 = vmul.f32 %v310, %v310
      %v327 = vmul.f32 %v311, %v311
      %v328 = vmul.f32 %v312, %v312
      %v329 = vmul.f32 %v313, %v313
      %v330 = vmul.f32 %v314, %v314
      %v331 = vmul.f32 %v315, %v315
      %v332 = vmul.f32 %v316, %v316
      %v333 = vmul.f32 %v317, %v317
      %v334 = vmul.f32 %v318, %v318
      %v335 = vmul.f32 %v319, %v319
      %v336 = vmul.f32 %v320, %v320
      %vm337 = vcmask 64512
      %v338 = vsel %vm337, %v321, 0.0
      %339 = vadd.xlane.f32.xlu0 %v338
      %v340 = vpop.xlane.xlu0 %339
      %v341 = vsel %vm337, %v322, 0.0
      %342 = vadd.xlane.f32.xlu0 %v341
      %v343 = vpop.xlane.xlu0 %342
      %v344 = vsel %vm337, %v323, 0.0
      %345 = vadd.xlane.f32.xlu0 %v344
      %v346 = vpop.xlane.xlu0 %345
      %v347 = vsel %vm337, %v324, 0.0
      %348 = vadd.xlane.f32.xlu0 %v347
      %v349 = vpop.xlane.xlu0 %348
      %v350 = vsel %vm337, %v325, 0.0
      %351 = vadd.xlane.f32.xlu0 %v350
      %v352 = vpop.xlane.xlu0 %351
      %v353 = vsel %vm337, %v326, 0.0
      %354 = vadd.xlane.f32.xlu0 %v353
      %v355 = vpop.xlane.xlu0 %354
      %v356 = vsel %vm337, %v327, 0.0
      %357 = vadd.xlane.f32.xlu0 %v356
      %v358 = vpop.xlane.xlu0 %357
      %v359 = vsel %vm337, %v328, 0.0
      %360 = vadd.xlane.f32.xlu0 %v359
      %v361 = vpop.xlane.xlu0 %360
      %v362 = vsel %vm337, %v329, 0.0
      %363 = vadd.xlane.f32.xlu0 %v362
      %v364 = vpop.xlane.xlu0 %363
      %v365 = vsel %vm337, %v330, 0.0
      %366 = vadd.xlane.f32.xlu0 %v365
      %v367 = vpop.xlane.xlu0 %366
      %v368 = vsel %vm337, %v331, 0.0
      %369 = vadd.xlane.f32.xlu0 %v368
      %v370 = vpop.xlane.xlu0 %369
      %v371 = vsel %vm337, %v332, 0.0
      %372 = vadd.xlane.f32.xlu0 %v371
      %v373 = vpop.xlane.xlu0 %372
      %v374 = vsel %vm337, %v333, 0.0
      %375 = vadd.xlane.f32.xlu0 %v374
      %v376 = vpop.xlane.xlu0 %375
      %v377 = vsel %vm337, %v334, 0.0
      %378 = vadd.xlane.f32.xlu0 %v377
      %v379 = vpop.xlane.xlu0 %378
      %v380 = vsel %vm337, %v335, 0.0
      %381 = vadd.xlane.f32.xlu0 %v380
      %v382 = vpop.xlane.xlu0 %381
      %v383 = vsel %vm337, %v336, 0.0
      %384 = vadd.xlane.f32.xlu0 %v383
      %v385 = vpop.xlane.xlu0 %384
      %v386 = vrsqrt.pop %v340
      %v387 = vmul.f32 %v386, %v340
      %v388 = vmul.f32 %v387, %v386
      %v389 = vmul.f32 0.5, %v388
      %v390 = vsub.f32 1.5, %v389
      %v391 = vmul.f32 %v386, %v390
      %v392 = vmul.f32 %v340, %v391
      %vm393 = vcmp.eq.f32.partialorder %v340, inf
      %v394 = vsel %vm393, %v340, %v392
      %vm395 = vcmp.eq.f32.partialorder %v340, 0.0
      %v396 = vand.u32 %v340, 2147483648
      %v397 = vsel %vm395, %v396, %v394
      %v398 = vrsqrt.pop %v343
      %v399 = vmul.f32 %v398, %v343
      %v400 = vmul.f32 %v399, %v398
      %v401 = vmul.f32 0.5, %v400
      %v402 = vsub.f32 1.5, %v401
      %v403 = vmul.f32 %v398, %v402
      %v404 = vmul.f32 %v343, %v403
      %vm405 = vcmp.eq.f32.partialorder %v343, inf
      %v406 = vsel %vm405, %v343, %v404
      %vm407 = vcmp.eq.f32.partialorder %v343, 0.0
      %v408 = vand.u32 %v343, 2147483648
      %v409 = vsel %vm407, %v408, %v406
      %v410 = vrsqrt.pop %v346
      %v411 = vmul.f32 %v410, %v346
      %v412 = vmul.f32 %v411, %v410
      %v413 = vmul.f32 0.5, %v412
      %v414 = vsub.f32 1.5, %v413
      %v415 = vmul.f32 %v410, %v414
      %v416 = vmul.f32 %v346, %v415
      %vm417 = vcmp.eq.f32.partialorder %v346, inf
      %v418 = vsel %vm417, %v346, %v416
      %vm419 = vcmp.eq.f32.partialorder %v346, 0.0
      %v420 = vand.u32 %v346, 2147483648
      %v421 = vsel %vm419, %v420, %v418
      %v422 = vrsqrt.pop %v349
      %v423 = vmul.f32 %v422, %v349
      %v424 = vmul.f32 %v423, %v422
      %v425 = vmul.f32 0.5, %v424
      %v426 = vsub.f32 1.5, %v425
      %v427 = vmul.f32 %v422, %v426
      %v428 = vmul.f32 %v349, %v427
      %vm429 = vcmp.eq.f32.partialorder %v349, inf
      %v430 = vsel %vm429, %v349, %v428
      %vm431 = vcmp.eq.f32.partialorder %v349, 0.0
      %v432 = vand.u32 %v349, 2147483648
      %v433 = vsel %vm431, %v432, %v430
      %v434 = vrsqrt.pop %v352
      %v435 = vmul.f32 %v434, %v352
      %v436 = vmul.f32 %v435, %v434
      %v437 = vmul.f32 0.5, %v436
      %v438 = vsub.f32 1.5, %v437
      %v439 = vmul.f32 %v434, %v438
      %v440 = vmul.f32 %v352, %v439
      %vm441 = vcmp.eq.f32.partialorder %v352, inf
      %v442 = vsel %vm441, %v352, %v440
      %vm443 = vcmp.eq.f32.partialorder %v352, 0.0
      %v444 = vand.u32 %v352, 2147483648
      %v445 = vsel %vm443, %v444, %v442
      %v446 = vrsqrt.pop %v355
      %v447 = vmul.f32 %v446, %v355
      %v448 = vmul.f32 %v447, %v446
      %v449 = vmul.f32 0.5, %v448
      %v450 = vsub.f32 1.5, %v449
      %v451 = vmul.f32 %v446, %v450
      %v452 = vmul.f32 %v355, %v451
      %vm453 = vcmp.eq.f32.partialorder %v355, inf
      %v454 = vsel %vm453, %v355, %v452
      %vm455 = vcmp.eq.f32.partialorder %v355, 0.0
      %v456 = vand.u32 %v355, 2147483648
      %v457 = vsel %vm455, %v456, %v454
      %v458 = vrsqrt.pop %v358
      %v459 = vmul.f32 %v458, %v358
      %v460 = vmul.f32 %v459, %v458
      %v461 = vmul.f32 0.5, %v460
      %v462 = vsub.f32 1.5, %v461
      %v463 = vmul.f32 %v458, %v462
      %v464 = vmul.f32 %v358, %v463
      %vm465 = vcmp.eq.f32.partialorder %v358, inf
      %v466 = vsel %vm465, %v358, %v464
      %vm467 = vcmp.eq.f32.partialorder %v358, 0.0
      %v468 = vand.u32 %v358, 2147483648
      %v469 = vsel %vm467, %v468, %v466
      %v470 = vrsqrt.pop %v361
      %v471 = vmul.f32 %v470, %v361
      %v472 = vmul.f32 %v471, %v470
      %v473 = vmul.f32 0.5, %v472
      %v474 = vsub.f32 1.5, %v473
      %v475 = vmul.f32 %v470, %v474
      %v476 = vmul.f32 %v361, %v475
      %vm477 = vcmp.eq.f32.partialorder %v361, inf
      %v478 = vsel %vm477, %v361, %v476
      %vm479 = vcmp.eq.f32.partialorder %v361, 0.0
      %v480 = vand.u32 %v361, 2147483648
      %v481 = vsel %vm479, %v480, %v478
      %v482 = vrsqrt.pop %v364
      %v483 = vmul.f32 %v482, %v364
      %v484 = vmul.f32 %v483, %v482
      %v485 = vmul.f32 0.5, %v484
      %v486 = vsub.f32 1.5, %v485
      %v487 = vmul.f32 %v482, %v486
      %v488 = vmul.f32 %v364, %v487
      %vm489 = vcmp.eq.f32.partialorder %v364, inf
      %v490 = vsel %vm489, %v364, %v488
      %vm491 = vcmp.eq.f32.partialorder %v364, 0.0
      %v492 = vand.u32 %v364, 2147483648
      %v493 = vsel %vm491, %v492, %v490
      %v494 = vrsqrt.pop %v367
      %v495 = vmul.f32 %v494, %v367
      %v496 = vmul.f32 %v495, %v494
      %v497 = vmul.f32 0.5, %v496
      %v498 = vsub.f32 1.5, %v497
      %v499 = vmul.f32 %v494, %v498
      %v500 = vmul.f32 %v367, %v499
      %vm501 = vcmp.eq.f32.partialorder %v367, inf
      %v502 = vsel %vm501, %v367, %v500
      %vm503 = vcmp.eq.f32.partialorder %v367, 0.0
      %v504 = vand.u32 %v367, 2147483648
      %v505 = vsel %vm503, %v504, %v502
      %v506 = vrsqrt.pop %v370
      %v507 = vmul.f32 %v506, %v370
      %v508 = vmul.f32 %v507, %v506
      %v509 = vmul.f32 0.5, %v508
      %v510 = vsub.f32 1.5, %v509
      %v511 = vmul.f32 %v506, %v510
      %v512 = vmul.f32 %v370, %v511
      %vm513 = vcmp.eq.f32.partialorder %v370, inf
      %v514 = vsel %vm513, %v370, %v512
      %vm515 = vcmp.eq.f32.partialorder %v370, 0.0
      %v516 = vand.u32 %v370, 2147483648
      %v517 = vsel %vm515, %v516, %v514
      %v518 = vrsqrt.pop %v373
      %v519 = vmul.f32 %v518, %v373
      %v520 = vmul.f32 %v519, %v518
      %v521 = vmul.f32 0.5, %v520
      %v522 = vsub.f32 1.5, %v521
      %v523 = vmul.f32 %v518, %v522
      %v524 = vmul.f32 %v373, %v523
      %vm525 = vcmp.eq.f32.partialorder %v373, inf
      %v526 = vsel %vm525, %v373, %v524
      %vm527 = vcmp.eq.f32.partialorder %v373, 0.0
      %v528 = vand.u32 %v373, 2147483648
      %v529 = vsel %vm527, %v528, %v526
      %v530 = vrsqrt.pop %v376
      %v531 = vmul.f32 %v530, %v376
      %v532 = vmul.f32 %v531, %v530
      %v533 = vmul.f32 0.5, %v532
      %v534 = vsub.f32 1.5, %v533
      %v535 = vmul.f32 %v530, %v534
      %v536 = vmul.f32 %v376, %v535
      %vm537 = vcmp.eq.f32.partialorder %v376, inf
      %v538 = vsel %vm537, %v376, %v536
      %vm539 = vcmp.eq.f32.partialorder %v376, 0.0
      %v540 = vand.u32 %v376, 2147483648
      %v541 = vsel %vm539, %v540, %v538
      %v542 = vrsqrt.pop %v379
      %v543 = vmul.f32 %v542, %v379
      %v544 = vmul.f32 %v543, %v542
      %v545 = vmul.f32 0.5, %v544
      %v546 = vsub.f32 1.5, %v545
      %v547 = vmul.f32 %v542, %v546
      %v548 = vmul.f32 %v379, %v547
      %vm549 = vcmp.eq.f32.partialorder %v379, inf
      %v550 = vsel %vm549, %v379, %v548
      %vm551 = vcmp.eq.f32.partialorder %v379, 0.0
      %v552 = vand.u32 %v379, 2147483648
      %v553 = vsel %vm551, %v552, %v550
      %v554 = vrsqrt.pop %v382
      %v555 = vmul.f32 %v554, %v382
      %v556 = vmul.f32 %v555, %v554
      %v557 = vmul.f32 0.5, %v556
      %v558 = vsub.f32 1.5, %v557
      %v559 = vmul.f32 %v554, %v558
      %v560 = vmul.f32 %v382, %v559
      %vm561 = vcmp.eq.f32.partialorder %v382, inf
      %v562 = vsel %vm561, %v382, %v560
      %vm563 = vcmp.eq.f32.partialorder %v382, 0.0
      %v564 = vand.u32 %v382, 2147483648
      %v565 = vsel %vm563, %v564, %v562
      %v566 = vrsqrt.pop %v385
      %v567 = vmul.f32 %v566, %v385
      %v568 = vmul.f32 %v567, %v566
      %v569 = vmul.f32 0.5, %v568
      %v570 = vsub.f32 1.5, %v569
      %v571 = vmul.f32 %v566, %v570
      %v572 = vmul.f32 %v385, %v571
      %vm573 = vcmp.eq.f32.partialorder %v385, inf
      %v574 = vsel %vm573, %v385, %v572
      %vm575 = vcmp.eq.f32.partialorder %v385, 0.0
      %v576 = vand.u32 %v385, 2147483648
      %v577 = vsel %vm575, %v576, %v574
      %v578 = vmax.f32 %v397, 1e-12
      %v579 = vmax.f32 %v409, 1e-12
      %v580 = vmax.f32 %v421, 1e-12
      %v581 = vmax.f32 %v433, 1e-12
      %v582 = vmax.f32 %v445, 1e-12
      %v583 = vmax.f32 %v457, 1e-12
      %v584 = vmax.f32 %v469, 1e-12
      %v585 = vmax.f32 %v481, 1e-12
      %v586 = vmax.f32 %v493, 1e-12
      %v587 = vmax.f32 %v505, 1e-12
      %v588 = vmax.f32 %v517, 1e-12
      %v589 = vmax.f32 %v529, 1e-12
      %v590 = vmax.f32 %v541, 1e-12
      %v591 = vmax.f32 %v553, 1e-12
      %v592 = vmax.f32 %v565, 1e-12
      %v593 = vmax.f32 %v577, 1e-12
      %v594 = vrcp.pop %v578
      %v595 = vmul.f32 %v578, %v594
      %v596 = vsub.f32 1.0, %v595
      %v597 = vmul.f32 %v594, %v596
      %v598 = vadd.f32 %v594, %v597
      %vm599 = vweird.f32 %v578
      %vm600 = vweird.f32 %v594
      %vm601 = vmor %vm599, %vm600
      %v602 = vsel %vm601, %v594, %v598
      %v603 = vand.u32 2147483647, %v578
      %vm604 = vcmp.eq.f32.partialorder %v603, 8.507059e+37
      %v605 = vand.u32 %v578, 2147483648
      %v606 = vor.u32 1.1754944e-38, %v605
      %v607 = vsel %vm604, %v606, %v602
      %v608 = vmul.f32 %v305, %v607
      %v609 = vrcp.pop %v579
      %v610 = vmul.f32 %v579, %v609
      %v611 = vsub.f32 1.0, %v610
      %v612 = vmul.f32 %v609, %v611
      %v613 = vadd.f32 %v609, %v612
      %vm614 = vweird.f32 %v579
      %vm615 = vweird.f32 %v609
      %vm616 = vmor %vm614, %vm615
      %v617 = vsel %vm616, %v609, %v613
      %v618 = vand.u32 2147483647, %v579
      %vm619 = vcmp.eq.f32.partialorder %v618, 8.507059e+37
      %v620 = vand.u32 %v579, 2147483648
      %v621 = vor.u32 1.1754944e-38, %v620
      %v622 = vsel %vm619, %v621, %v617
      %v623 = vmul.f32 %v306, %v622
      %v624 = vrcp.pop %v580
      %v625 = vmul.f32 %v580, %v624
      %v626 = vsub.f32 1.0, %v625
      %v627 = vmul.f32 %v624, %v626
      %v628 = vadd.f32 %v624, %v627
      %vm629 = vweird.f32 %v580
      %vm630 = vweird.f32 %v624
      %vm631 = vmor %vm629, %vm630
      %v632 = vsel %vm631, %v624, %v628
      %v633 = vand.u32 2147483647, %v580
      %vm634 = vcmp.eq.f32.partialorder %v633, 8.507059e+37
      %v635 = vand.u32 %v580, 2147483648
      %v636 = vor.u32 1.1754944e-38, %v635
      %v637 = vsel %vm634, %v636, %v632
      %v638 = vmul.f32 %v307, %v637
      %v639 = vrcp.pop %v581
      %v640 = vmul.f32 %v581, %v639
      %v641 = vsub.f32 1.0, %v640
      %v642 = vmul.f32 %v639, %v641
      %v643 = vadd.f32 %v639, %v642
      %vm644 = vweird.f32 %v581
      %vm645 = vweird.f32 %v639
      %vm646 = vmor %vm644, %vm645
      %v647 = vsel %vm646, %v639, %v643
      %v648 = vand.u32 2147483647, %v581
      %vm649 = vcmp.eq.f32.partialorder %v648, 8.507059e+37
      %v650 = vand.u32 %v581, 2147483648
      %v651 = vor.u32 1.1754944e-38, %v650
      %v652 = vsel %vm649, %v651, %v647
      %v653 = vmul.f32 %v308, %v652
      %v654 = vrcp.pop %v582
      %v655 = vmul.f32 %v582, %v654
      %v656 = vsub.f32 1.0, %v655
      %v657 = vmul.f32 %v654, %v656
      %v658 = vadd.f32 %v654, %v657
      %vm659 = vweird.f32 %v582
      %vm660 = vweird.f32 %v654
      %vm661 = vmor %vm659, %vm660
      %v662 = vsel %vm661, %v654, %v658
      %v663 = vand.u32 2147483647, %v582
      %vm664 = vcmp.eq.f32.partialorder %v663, 8.507059e+37
      %v665 = vand.u32 %v582, 2147483648
      %v666 = vor.u32 1.1754944e-38, %v665
      %v667 = vsel %vm664, %v666, %v662
      %v668 = vmul.f32 %v309, %v667
      %v669 = vrcp.pop %v583
      %v670 = vmul.f32 %v583, %v669
      %v671 = vsub.f32 1.0, %v670
      %v672 = vmul.f32 %v669, %v671
      %v673 = vadd.f32 %v669, %v672
      %vm674 = vweird.f32 %v583
      %vm675 = vweird.f32 %v669
      %vm676 = vmor %vm674, %vm675
      %v677 = vsel %vm676, %v669, %v673
      %v678 = vand.u32 2147483647, %v583
      %vm679 = vcmp.eq.f32.partialorder %v678, 8.507059e+37
      %v680 = vand.u32 %v583, 2147483648
      %v681 = vor.u32 1.1754944e-38, %v680
      %v682 = vsel %vm679, %v681, %v677
      %v683 = vmul.f32 %v310, %v682
      %v684 = vrcp.pop %v584
      %v685 = vmul.f32 %v584, %v684
      %v686 = vsub.f32 1.0, %v685
      %v687 = vmul.f32 %v684, %v686
      %v688 = vadd.f32 %v684, %v687
      %vm689 = vweird.f32 %v584
      %vm690 = vweird.f32 %v684
      %vm691 = vmor %vm689, %vm690
      %v692 = vsel %vm691, %v684, %v688
      %v693 = vand.u32 2147483647, %v584
      %vm694 = vcmp.eq.f32.partialorder %v693, 8.507059e+37
      %v695 = vand.u32 %v584, 2147483648
      %v696 = vor.u32 1.1754944e-38, %v695
      %v697 = vsel %vm694, %v696, %v692
      %v698 = vmul.f32 %v311, %v697
      %v699 = vrcp.pop %v585
      %v700 = vmul.f32 %v585, %v699
      %v701 = vsub.f32 1.0, %v700
      %v702 = vmul.f32 %v699, %v701
      %v703 = vadd.f32 %v699, %v702
      %vm704 = vweird.f32 %v585
      %vm705 = vweird.f32 %v699
      %vm706 = vmor %vm704, %vm705
      %v707 = vsel %vm706, %v699, %v703
      %v708 = vand.u32 2147483647, %v585
      %vm709 = vcmp.eq.f32.partialorder %v708, 8.507059e+37
      %v710 = vand.u32 %v585, 2147483648
      %v711 = vor.u32 1.1754944e-38, %v710
      %v712 = vsel %vm709, %v711, %v707
      %v713 = vmul.f32 %v312, %v712
      %v714 = vrcp.pop %v586
      %v715 = vmul.f32 %v586, %v714
      %v716 = vsub.f32 1.0, %v715
      %v717 = vmul.f32 %v714, %v716
      %v718 = vadd.f32 %v714, %v717
      %vm719 = vweird.f32 %v586
      %vm720 = vweird.f32 %v714
      %vm721 = vmor %vm719, %vm720
      %v722 = vsel %vm721, %v714, %v718
      %v723 = vand.u32 2147483647, %v586
      %vm724 = vcmp.eq.f32.partialorder %v723, 8.507059e+37
      %v725 = vand.u32 %v586, 2147483648
      %v726 = vor.u32 1.1754944e-38, %v725
      %v727 = vsel %vm724, %v726, %v722
      %v728 = vmul.f32 %v313, %v727
      %v729 = vrcp.pop %v587
      %v730 = vmul.f32 %v587, %v729
      %v731 = vsub.f32 1.0, %v730
      %v732 = vmul.f32 %v729, %v731
      %v733 = vadd.f32 %v729, %v732
      %vm734 = vweird.f32 %v587
      %vm735 = vweird.f32 %v729
      %vm736 = vmor %vm734, %vm735
      %v737 = vsel %vm736, %v729, %v733
      %v738 = vand.u32 2147483647, %v587
      %vm739 = vcmp.eq.f32.partialorder %v738, 8.507059e+37
      %v740 = vand.u32 %v587, 2147483648
      %v741 = vor.u32 1.1754944e-38, %v740
      %v742 = vsel %vm739, %v741, %v737
      %v743 = vmul.f32 %v314, %v742
      %v744 = vrcp.pop %v588
      %v745 = vmul.f32 %v588, %v744
      %v746 = vsub.f32 1.0, %v745
      %v747 = vmul.f32 %v744, %v746
      %v748 = vadd.f32 %v744, %v747
      %vm749 = vweird.f32 %v588
      %vm750 = vweird.f32 %v744
      %vm751 = vmor %vm749, %vm750
      %v752 = vsel %vm751, %v744, %v748
      %v753 = vand.u32 2147483647, %v588
      %vm754 = vcmp.eq.f32.partialorder %v753, 8.507059e+37
      %v755 = vand.u32 %v588, 2147483648
      %v756 = vor.u32 1.1754944e-38, %v755
      %v757 = vsel %vm754, %v756, %v752
      %v758 = vmul.f32 %v315, %v757
      %v759 = vrcp.pop %v589
      %v760 = vmul.f32 %v589, %v759
      %v761 = vsub.f32 1.0, %v760
      %v762 = vmul.f32 %v759, %v761
      %v763 = vadd.f32 %v759, %v762
      %vm764 = vweird.f32 %v589
      %vm765 = vweird.f32 %v759
      %vm766 = vmor %vm764, %vm765
      %v767 = vsel %vm766, %v759, %v763
      %v768 = vand.u32 2147483647, %v589
      %vm769 = vcmp.eq.f32.partialorder %v768, 8.507059e+37
      %v770 = vand.u32 %v589, 2147483648
      %v771 = vor.u32 1.1754944e-38, %v770
      %v772 = vsel %vm769, %v771, %v767
      %v773 = vmul.f32 %v316, %v772
      %v774 = vrcp.pop %v590
      %v775 = vmul.f32 %v590, %v774
      %v776 = vsub.f32 1.0, %v775
      %v777 = vmul.f32 %v774, %v776
      %v778 = vadd.f32 %v774, %v777
      %vm779 = vweird.f32 %v590
      %vm780 = vweird.f32 %v774
      %vm781 = vmor %vm779, %vm780
      %v782 = vsel %vm781, %v774, %v778
      %v783 = vand.u32 2147483647, %v590
      %vm784 = vcmp.eq.f32.partialorder %v783, 8.507059e+37
      %v785 = vand.u32 %v590, 2147483648
      %v786 = vor.u32 1.1754944e-38, %v785
      %v787 = vsel %vm784, %v786, %v782
      %v788 = vmul.f32 %v317, %v787
      %v789 = vrcp.pop %v591
      %v790 = vmul.f32 %v591, %v789
      %v791 = vsub.f32 1.0, %v790
      %v792 = vmul.f32 %v789, %v791
      %v793 = vadd.f32 %v789, %v792
      %vm794 = vweird.f32 %v591
      %vm795 = vweird.f32 %v789
      %vm796 = vmor %vm794, %vm795
      %v797 = vsel %vm796, %v789, %v793
      %v798 = vand.u32 2147483647, %v591
      %vm799 = vcmp.eq.f32.partialorder %v798, 8.507059e+37
      %v800 = vand.u32 %v591, 2147483648
      %v801 = vor.u32 1.1754944e-38, %v800
      %v802 = vsel %vm799, %v801, %v797
      %v803 = vmul.f32 %v318, %v802
      %v804 = vrcp.pop %v592
      %v805 = vmul.f32 %v592, %v804
      %v806 = vsub.f32 1.0, %v805
      %v807 = vmul.f32 %v804, %v806
      %v808 = vadd.f32 %v804, %v807
      %vm809 = vweird.f32 %v592
      %vm810 = vweird.f32 %v804
      %vm811 = vmor %vm809, %vm810
      %v812 = vsel %vm811, %v804, %v808
      %v813 = vand.u32 2147483647, %v592
      %vm814 = vcmp.eq.f32.partialorder %v813, 8.507059e+37
      %v815 = vand.u32 %v592, 2147483648
      %v816 = vor.u32 1.1754944e-38, %v815
      %v817 = vsel %vm814, %v816, %v812
      %v818 = vmul.f32 %v319, %v817
      %v819 = vrcp.pop %v593
      %v820 = vmul.f32 %v593, %v819
      %v821 = vsub.f32 1.0, %v820
      %v822 = vmul.f32 %v819, %v821
      %v823 = vadd.f32 %v819, %v822
      %vm824 = vweird.f32 %v593
      %vm825 = vweird.f32 %v819
      %vm826 = vmor %vm824, %vm825
      %v827 = vsel %vm826, %v819, %v823
      %v828 = vand.u32 2147483647, %v593
      %vm829 = vcmp.eq.f32.partialorder %v828, 8.507059e+37
      %v830 = vand.u32 %v593, 2147483648
      %v831 = vor.u32 1.1754944e-38, %v830
      %v832 = vsel %vm829, %v831, %v827
      %v833 = vmul.f32 %v320, %v832
      %v834 = vpack.c.bf16 %v623, %v608
      %v835 = vpack.c.bf16 %v653, %v638
      %v836 = vpack.c.bf16 %v683, %v668
      %v837 = vpack.c.bf16 %v713, %v698
      %v838 = vpack.c.bf16 %v743, %v728
      %v839 = vpack.c.bf16 %v773, %v758
      %v840 = vpack.c.bf16 %v803, %v788
      %v841 = vpack.c.bf16 %v833, %v818
      %v842 = vmul.f32 %v296, %v296
      %v843 = vrot.slane %v842, 4
      %v844 = vadd.f32 %v842, %v843
      %v845 = vrot.slane %v844, 2
      %v846 = vadd.f32 %v844, %v845
      %v847 = vrot.slane %v846, 1
      %v848 = vadd.f32 %v846, %v847
      %v849 = vrsqrt.pop %v848
      %v850 = vmul.f32 %v849, %v848
      %v851 = vmul.f32 %v850, %v849
      %v852 = vmul.f32 0.5, %v851
      %v853 = vsub.f32 1.5, %v852
      %v854 = vmul.f32 %v849, %v853
      %v855 = vmul.f32 %v848, %v854
      %vm856 = vcmp.eq.f32.partialorder %v848, inf
      %v857 = vsel %vm856, %v848, %v855
      %vm858 = vcmp.eq.f32.partialorder %v848, 0.0
      %v859 = vand.u32 %v848, 2147483648
      %v860 = vsel %vm858, %v859, %v857
      %v861 = vmax.f32 %v860, 1e-12
      %v862 = vrcp.pop %v861
      %v863 = vmul.f32 %v861, %v862
      %v864 = vsub.f32 1.0, %v863
      %v865 = vmul.f32 %v862, %v864
      %v866 = vadd.f32 %v862, %v865
      %vm867 = vweird.f32 %v861
      %vm868 = vweird.f32 %v862
      %vm869 = vmor %vm867, %vm868
      %v870 = vsel %vm869, %v862, %v866
      %v871 = vand.u32 2147483647, %v861
      %vm872 = vcmp.eq.f32.partialorder %v871, 8.507059e+37
      %v873 = vand.u32 %v861, 2147483648
      %v874 = vor.u32 1.1754944e-38, %v873
      %v875 = vsel %vm872, %v874, %v870
      %v876 = vmul.f32 %v296, %v875
      %v877 = vpack.c.bf16 %v876, %v876
      %v879 = vsel %vm337, %v834, 0
      %v882 = vsel %vm337, %v835, 0
      %v885 = vsel %vm337, %v836, 0
      %v888 = vsel %vm337, %v837, 0
      %v891 = vsel %vm337, %v838, 0
      %v894 = vsel %vm337, %v839, 0
      %v897 = vsel %vm337, %v840, 0
      %v900 = vsel %vm337, %v841, 0
      %vm902 = vcmask 1043456
      %v904 = vsel %vm902, %v877, 0
      %906 = vmatpush.bf16.msra.mxu0 0
      %907 = vmatpush.bf16.msra.mxu0 0
      %908 = vmatpush.bf16.msra.mxu0 0
      %909 = vmatpush.bf16.msra.mxu0 0
      %910 = vmatpush.bf16.msra.mxu0 0
      %911 = vmatpush.bf16.msra.mxu0 0
      %912 = vmatpush.bf16.msra.mxu0 0
      %913 = vmatpush.bf16.msra.mxu0 %v904
      %914 = vmatmul.bf16.gmra.mxu0 %v879
      %v915 = vpop.f32.mrf.mxu0
      %v916 = vadd.f32 0.0, %v915
      %v917 = vpop.f32.mrf.mxu0
      %v918 = vadd.f32 0.0, %v917
      %919 = vmatmul.bf16.gmra.mxu0 %v882
      %v920 = vpop.f32.mrf.mxu0
      %v921 = vadd.f32 0.0, %v920
      %v922 = vpop.f32.mrf.mxu0
      %v923 = vadd.f32 0.0, %v922
      %924 = vmatmul.bf16.gmra.mxu0 %v885
      %v925 = vpop.f32.mrf.mxu0
      %v926 = vadd.f32 0.0, %v925
      %v927 = vpop.f32.mrf.mxu0
      %v928 = vadd.f32 0.0, %v927
      %929 = vmatmul.bf16.gmra.mxu0 %v888
      %v930 = vpop.f32.mrf.mxu0
      %v931 = vadd.f32 0.0, %v930
      %v932 = vpop.f32.mrf.mxu0
      %v933 = vadd.f32 0.0, %v932
      %934 = vmatmul.bf16.gmra.mxu0 %v891
      %v935 = vpop.f32.mrf.mxu0
      %v936 = vadd.f32 0.0, %v935
      %v937 = vpop.f32.mrf.mxu0
      %v938 = vadd.f32 0.0, %v937
      %939 = vmatmul.bf16.gmra.mxu0 %v894
      %v940 = vpop.f32.mrf.mxu0
      %v941 = vadd.f32 0.0, %v940
      %v942 = vpop.f32.mrf.mxu0
      %v943 = vadd.f32 0.0, %v942
      %944 = vmatmul.bf16.gmra.mxu0 %v897
      %v945 = vpop.f32.mrf.mxu0
      %v946 = vadd.f32 0.0, %v945
      %v947 = vpop.f32.mrf.mxu0
      %v948 = vadd.f32 0.0, %v947
      %949 = vmatmul.bf16.gmra.mxu0 %v900
      %v950 = vpop.f32.mrf.mxu0
      %v951 = vadd.f32 0.0, %v950
      %v952 = vpop.f32.mrf.mxu0
      %v953 = vadd.f32 0.0, %v952
      %954 = vdwg.mxu0
      %v955 = vadd.f32 %v916, %v918
      %v956 = vadd.f32 %v955, %v921
      %v957 = vadd.f32 %v956, %v923
      %v958 = vadd.f32 %v957, %v926
      %v959 = vadd.f32 %v958, %v928
      %v960 = vadd.f32 %v959, %v931
      %v961 = vadd.f32 %v960, %v933
      %v962 = vadd.f32 %v961, %v936
      %v963 = vadd.f32 %v962, %v938
      %v964 = vadd.f32 %v963, %v941
      %v965 = vadd.f32 %v964, %v943
      %v966 = vadd.f32 %v965, %v946
      %v967 = vadd.f32 %v966, %v948
      %v968 = vadd.f32 %v967, %v951
      %v969 = vadd.f32 %v968, %v953
      %v970 = vrot.slane %v969, 4
      %v971 = vadd.f32 %v969, %v970
      %v972 = vrot.slane %v971, 2
      %v973 = vadd.f32 %v971, %v972
      %v974 = vrot.slane %v973, 1
      %v975 = vadd.f32 %v973, %v974
      %v976 = vmul.f32 %v916, %v916
      %v977 = vmul.f32 %v918, %v918
      %v978 = vmul.f32 %v921, %v921
      %v979 = vmul.f32 %v923, %v923
      %v980 = vmul.f32 %v926, %v926
      %v981 = vmul.f32 %v928, %v928
      %v982 = vmul.f32 %v931, %v931
      %v983 = vmul.f32 %v933, %v933
      %v984 = vmul.f32 %v936, %v936
      %v985 = vmul.f32 %v938, %v938
      %v986 = vmul.f32 %v941, %v941
      %v987 = vmul.f32 %v943, %v943
      %v988 = vmul.f32 %v946, %v946
      %v989 = vmul.f32 %v948, %v948
      %v990 = vmul.f32 %v951, %v951
      %v991 = vmul.f32 %v953, %v953
      %v992 = vadd.f32 %v976, %v977
      %v993 = vadd.f32 %v992, %v978
      %v994 = vadd.f32 %v993, %v979
      %v995 = vadd.f32 %v994, %v980
      %v996 = vadd.f32 %v995, %v981
      %v997 = vadd.f32 %v996, %v982
      %v998 = vadd.f32 %v997, %v983
      %v999 = vadd.f32 %v998, %v984
      %v1000 = vadd.f32 %v999, %v985
      %v1001 = vadd.f32 %v1000, %v986
      %v1002 = vadd.f32 %v1001, %v987
      %v1003 = vadd.f32 %v1002, %v988
      %v1004 = vadd.f32 %v1003, %v989
      %v1005 = vadd.f32 %v1004, %v990
      %v1006 = vadd.f32 %v1005, %v991
      %v1007 = vrot.slane %v1006, 4
      %v1008 = vadd.f32 %v1006, %v1007
      %v1009 = vrot.slane %v1008, 2
      %v1010 = vadd.f32 %v1008, %v1009
      %v1011 = vrot.slane %v1010, 1
      %v1012 = vadd.f32 %v1010, %v1011
      %v1013 = vmul.f32 %v975, 0.0078125
      %v1014 = vmul.f32 %v975, %v1013
      %v1015 = vsub.f32 %v1012, %v1014
      %v1016 = vmax.f32 %v1015, 0.0
      %v1017 = vmul.f32 %v1016, 0.007874016
      %v1018 = vrsqrt.pop %v1017
      %v1019 = vmul.f32 %v1018, %v1017
      %v1020 = vmul.f32 %v1019, %v1018
      %v1021 = vmul.f32 0.5, %v1020
      %v1022 = vsub.f32 1.5, %v1021
      %v1023 = vmul.f32 %v1018, %v1022
      %v1024 = vmul.f32 %v1017, %v1023
      %vm1025 = vcmp.eq.f32.partialorder %v1017, inf
      %v1026 = vsel %vm1025, %v1017, %v1024
      %vm1027 = vcmp.eq.f32.partialorder %v1017, 0.0
      %v1028 = vand.u32 %v1017, 2147483648
      %v1029 = vsel %vm1027, %v1028, %v1026
      %v1030 = vadd.f32 %v1029, 1e-10
      %v1031 = vmax.f32 %v916, %v926
      %v1032 = vmax.f32 %v918, %v928
      %v1033 = vmax.f32 %v921, %v931
      %v1034 = vmax.f32 %v923, %v933
      %v1035 = vmax.f32 %v1031, %v936
      %v1036 = vmax.f32 %v1032, %v938
      %v1037 = vmax.f32 %v1033, %v941
      %v1038 = vmax.f32 %v1034, %v943
      %v1039 = vmax.f32 %v1035, %v946
      %v1040 = vmax.f32 %v1036, %v948
      %v1041 = vmax.f32 %v1037, %v951
      %v1042 = vmax.f32 %v1038, %v953
      %v1043 = vmax.f32 %v1039, %v1040
      %v1044 = vmax.f32 %v1041, %v1042
      %v1045 = vmax.f32 %v1043, %v1044
      %v1046 = vrot.slane %v1045, 4
      %v1047 = vmax.f32 %v1045, %v1046
      %v1048 = vrot.slane %v1047, 2
      %v1049 = vmax.f32 %v1047, %v1048
      %v1050 = vrot.slane %v1049, 1
      %v1051 = vmax.f32 %v1049, %v1050
      %v1052 = vsub.f32 %v916, %v1051
      %v1053 = vsub.f32 %v918, %v1051
      %v1054 = vsub.f32 %v921, %v1051
      %v1055 = vsub.f32 %v923, %v1051
      %v1056 = vsub.f32 %v926, %v1051
      %v1057 = vsub.f32 %v928, %v1051
      %v1058 = vsub.f32 %v931, %v1051
      %v1059 = vsub.f32 %v933, %v1051
      %v1060 = vsub.f32 %v936, %v1051
      %v1061 = vsub.f32 %v938, %v1051
      %v1062 = vsub.f32 %v941, %v1051
      %v1063 = vsub.f32 %v943, %v1051
      %v1064 = vsub.f32 %v946, %v1051
      %v1065 = vsub.f32 %v948, %v1051
      %v1066 = vsub.f32 %v951, %v1051
      %v1067 = vsub.f32 %v953, %v1051
      %v1068 = vrcp.pop %v1030
      %v1069 = vmul.f32 %v1030, %v1068
      %v1070 = vsub.f32 1.0, %v1069
      %v1071 = vmul.f32 %v1068, %v1070
      %v1072 = vadd.f32 %v1068, %v1071
      %vm1073 = vweird.f32 %v1030
      %vm1074 = vweird.f32 %v1068
      %vm1075 = vmor %vm1073, %vm1074
      %v1076 = vsel %vm1075, %v1068, %v1072
      %v1077 = vand.u32 2147483647, %v1030
      %vm1078 = vcmp.eq.f32.partialorder %v1077, 8.507059e+37
      %v1079 = vand.u32 %v1030, 2147483648
      %v1080 = vor.u32 1.1754944e-38, %v1079
      %v1081 = vsel %vm1078, %v1080, %v1076
      %v1082 = vmul.f32 1.0, %v1081
      %v1083 = vmul.f32 %v1052, %v1082
      %v1084 = vmul.f32 %v1053, %v1082
      %v1085 = vmul.f32 %v1054, %v1082
      %v1086 = vmul.f32 %v1055, %v1082
      %v1087 = vmul.f32 %v1056, %v1082
      %v1088 = vmul.f32 %v1057, %v1082
      %v1089 = vmul.f32 %v1058, %v1082
      %v1090 = vmul.f32 %v1059, %v1082
      %v1091 = vmul.f32 %v1060, %v1082
      %v1092 = vmul.f32 %v1061, %v1082
      %v1093 = vmul.f32 %v1062, %v1082
      %v1094 = vmul.f32 %v1063, %v1082
      %v1095 = vmul.f32 %v1064, %v1082
      %v1096 = vmul.f32 %v1065, %v1082
      %v1097 = vmul.f32 %v1066, %v1082
      %v1098 = vmul.f32 %v1067, %v1082
      %v1099 = vmul.f32 %v1083, 1.442695
      %v1100 = vpow.pop %v1099
      %v1101 = vmul.f32 %v1084, 1.442695
      %v1102 = vpow.pop %v1101
      %v1103 = vmul.f32 %v1085, 1.442695
      %v1104 = vpow.pop %v1103
      %v1105 = vmul.f32 %v1086, 1.442695
      %v1106 = vpow.pop %v1105
      %v1107 = vmul.f32 %v1087, 1.442695
      %v1108 = vpow.pop %v1107
      %v1109 = vmul.f32 %v1088, 1.442695
      %v1110 = vpow.pop %v1109
      %v1111 = vmul.f32 %v1089, 1.442695
      %v1112 = vpow.pop %v1111
      %v1113 = vmul.f32 %v1090, 1.442695
      %v1114 = vpow.pop %v1113
      %v1115 = vmul.f32 %v1091, 1.442695
      %v1116 = vpow.pop %v1115
      %v1117 = vmul.f32 %v1092, 1.442695
      %v1118 = vpow.pop %v1117
      %v1119 = vmul.f32 %v1093, 1.442695
      %v1120 = vpow.pop %v1119
      %v1121 = vmul.f32 %v1094, 1.442695
      %v1122 = vpow.pop %v1121
      %v1123 = vmul.f32 %v1095, 1.442695
      %v1124 = vpow.pop %v1123
      %v1125 = vmul.f32 %v1096, 1.442695
      %v1126 = vpow.pop %v1125
      %v1127 = vmul.f32 %v1097, 1.442695
      %v1128 = vpow.pop %v1127
      %v1129 = vmul.f32 %v1098, 1.442695
      %v1130 = vpow.pop %v1129
      %v1131 = vadd.f32 %v1100, %v1102
      %v1132 = vadd.f32 %v1131, %v1104
      %v1133 = vadd.f32 %v1132, %v1106
      %v1134 = vadd.f32 %v1133, %v1108
      %v1135 = vadd.f32 %v1134, %v1110
      %v1136 = vadd.f32 %v1135, %v1112
      %v1137 = vadd.f32 %v1136, %v1114
      %v1138 = vadd.f32 %v1137, %v1116
      %v1139 = vadd.f32 %v1138, %v1118
      %v1140 = vadd.f32 %v1139, %v1120
      %v1141 = vadd.f32 %v1140, %v1122
      %v1142 = vadd.f32 %v1141, %v1124
      %v1143 = vadd.f32 %v1142, %v1126
      %v1144 = vadd.f32 %v1143, %v1128
      %v1145 = vadd.f32 %v1144, %v1130
      %v1146 = vrot.slane %v1145, 4
      %v1147 = vadd.f32 %v1145, %v1146
      %v1148 = vrot.slane %v1147, 2
      %v1149 = vadd.f32 %v1147, %v1148
      %v1150 = vrot.slane %v1149, 1
      %v1151 = vadd.f32 %v1149, %v1150
      %v1152 = vpack.c.bf16 %v296, %v296
      %v1153 = vpack.c.bf16 %v1102, %v1100
      %v1154 = vpack.c.bf16 %v1106, %v1104
      %v1155 = vpack.c.bf16 %v1110, %v1108
      %v1156 = vpack.c.bf16 %v1114, %v1112
      %v1157 = vpack.c.bf16 %v1118, %v1116
      %v1158 = vpack.c.bf16 %v1122, %v1120
      %v1159 = vpack.c.bf16 %v1126, %v1124
      %v1160 = vpack.c.bf16 %v1130, %v1128
      %1161 = vmatpush.bf16.msra.mxu0 %v1160
      %1162 = vmatpush.bf16.msra.mxu0 %v1159
      %1163 = vmatpush.bf16.msra.mxu0 %v1158
      %1164 = vmatpush.bf16.msra.mxu0 %v1157
      %1165 = vmatpush.bf16.msra.mxu0 %v1156
      %1166 = vmatpush.bf16.msra.mxu0 %v1155
      %1167 = vmatpush.bf16.msra.mxu0 %v1154
      %1168 = vmatpush.bf16.msra.mxu0 %v1153
      %1169 = vmatmul.bf16.gmra.mxu0 %v1152
      %v1170 = vpop.f32.mrf.mxu0
      %v1171 = vadd.f32 0.0, %v1170
      %v1172 = vpop.f32.mrf.mxu0
      %1173 = vdwg.mxu0
      %v1174 = vrcp.pop %v1151
      %v1175 = vmul.f32 %v1151, %v1174
      %v1176 = vsub.f32 1.0, %v1175
      %v1177 = vmul.f32 %v1174, %v1176
      %v1178 = vadd.f32 %v1174, %v1177
      %vm1179 = vweird.f32 %v1151
      %vm1180 = vweird.f32 %v1174
      %vm1181 = vmor %vm1179, %vm1180
      %v1182 = vsel %vm1181, %v1174, %v1178
      %v1183 = vand.u32 2147483647, %v1151
      %vm1184 = vcmp.eq.f32.partialorder %v1183, 8.507059e+37
      %v1185 = vand.u32 %v1151, 2147483648
      %v1186 = vor.u32 1.1754944e-38, %v1185
      %v1187 = vsel %vm1184, %v1186, %v1182
      %v1188 = vmul.f32 1.0, %v1187
      %v1189 = vmul.f32 %v1171, %v1188
      %v1190 = vmul.f32 %v296, 0.5
      %v1191 = vmul.f32 %v1189, 0.5
      %v1192 = vadd.f32 %v1190, %v1191
      %v1193 = vmul.f32 %v288, %v288
      %v1194 = vmul.f32 %v289, %v289
      %v1195 = vmul.f32 %v290, %v290
      %v1196 = vmul.f32 %v291, %v291
      %v1197 = vmul.f32 %v292, %v292
      %v1198 = vmul.f32 %v293, %v293
      %v1199 = vmul.f32 %v294, %v294
      %v1200 = vmul.f32 %v295, %v295
      %v1201 = vsel %vm337, %v1193, 0.0
      %1202 = vadd.xlane.f32.xlu0 %v1201
      %v1203 = vpop.xlane.xlu0 %1202
      %v1204 = vsel %vm337, %v1194, 0.0
      %1205 = vadd.xlane.f32.xlu0 %v1204
      %v1206 = vpop.xlane.xlu0 %1205
      %v1207 = vsel %vm337, %v1195, 0.0
      %1208 = vadd.xlane.f32.xlu0 %v1207
      %v1209 = vpop.xlane.xlu0 %1208
      %v1210 = vsel %vm337, %v1196, 0.0
      %1211 = vadd.xlane.f32.xlu0 %v1210
      %v1212 = vpop.xlane.xlu0 %1211
      %v1213 = vsel %vm337, %v1197, 0.0
      %1214 = vadd.xlane.f32.xlu0 %v1213
      %v1215 = vpop.xlane.xlu0 %1214
      %v1216 = vsel %vm337, %v1198, 0.0
      %1217 = vadd.xlane.f32.xlu0 %v1216
      %v1218 = vpop.xlane.xlu0 %1217
      %v1219 = vsel %vm337, %v1199, 0.0
      %1220 = vadd.xlane.f32.xlu0 %v1219
      %v1221 = vpop.xlane.xlu0 %1220
      %v1222 = vsel %vm337, %v1200, 0.0
      %1223 = vadd.xlane.f32.xlu0 %v1222
      %v1224 = vpop.xlane.xlu0 %1223
      %v1225 = vrsqrt.pop %v1203
      %v1226 = vmul.f32 %v1225, %v1203
      %v1227 = vmul.f32 %v1226, %v1225
      %v1228 = vmul.f32 0.5, %v1227
      %v1229 = vsub.f32 1.5, %v1228
      %v1230 = vmul.f32 %v1225, %v1229
      %v1231 = vmul.f32 %v1203, %v1230
      %vm1232 = vcmp.eq.f32.partialorder %v1203, inf
      %v1233 = vsel %vm1232, %v1203, %v1231
      %vm1234 = vcmp.eq.f32.partialorder %v1203, 0.0
      %v1235 = vand.u32 %v1203, 2147483648
      %v1236 = vsel %vm1234, %v1235, %v1233
      %v1237 = vrsqrt.pop %v1206
      %v1238 = vmul.f32 %v1237, %v1206
      %v1239 = vmul.f32 %v1238, %v1237
      %v1240 = vmul.f32 0.5, %v1239
      %v1241 = vsub.f32 1.5, %v1240
      %v1242 = vmul.f32 %v1237, %v1241
      %v1243 = vmul.f32 %v1206, %v1242
      %vm1244 = vcmp.eq.f32.partialorder %v1206, inf
      %v1245 = vsel %vm1244, %v1206, %v1243
      %vm1246 = vcmp.eq.f32.partialorder %v1206, 0.0
      %v1247 = vand.u32 %v1206, 2147483648
      %v1248 = vsel %vm1246, %v1247, %v1245
      %v1249 = vrsqrt.pop %v1209
      %v1250 = vmul.f32 %v1249, %v1209
      %v1251 = vmul.f32 %v1250, %v1249
      %v1252 = vmul.f32 0.5, %v1251
      %v1253 = vsub.f32 1.5, %v1252
      %v1254 = vmul.f32 %v1249, %v1253
      %v1255 = vmul.f32 %v1209, %v1254
      %vm1256 = vcmp.eq.f32.partialorder %v1209, inf
      %v1257 = vsel %vm1256, %v1209, %v1255
      %vm1258 = vcmp.eq.f32.partialorder %v1209, 0.0
      %v1259 = vand.u32 %v1209, 2147483648
      %v1260 = vsel %vm1258, %v1259, %v1257
      %v1261 = vrsqrt.pop %v1212
      %v1262 = vmul.f32 %v1261, %v1212
      %v1263 = vmul.f32 %v1262, %v1261
      %v1264 = vmul.f32 0.5, %v1263
      %v1265 = vsub.f32 1.5, %v1264
      %v1266 = vmul.f32 %v1261, %v1265
      %v1267 = vmul.f32 %v1212, %v1266
      %vm1268 = vcmp.eq.f32.partialorder %v1212, inf
      %v1269 = vsel %vm1268, %v1212, %v1267
      %vm1270 = vcmp.eq.f32.partialorder %v1212, 0.0
      %v1271 = vand.u32 %v1212, 2147483648
      %v1272 = vsel %vm1270, %v1271, %v1269
      %v1273 = vrsqrt.pop %v1215
      %v1274 = vmul.f32 %v1273, %v1215
      %v1275 = vmul.f32 %v1274, %v1273
      %v1276 = vmul.f32 0.5, %v1275
      %v1277 = vsub.f32 1.5, %v1276
      %v1278 = vmul.f32 %v1273, %v1277
      %v1279 = vmul.f32 %v1215, %v1278
      %vm1280 = vcmp.eq.f32.partialorder %v1215, inf
      %v1281 = vsel %vm1280, %v1215, %v1279
      %vm1282 = vcmp.eq.f32.partialorder %v1215, 0.0
      %v1283 = vand.u32 %v1215, 2147483648
      %v1284 = vsel %vm1282, %v1283, %v1281
      %v1285 = vrsqrt.pop %v1218
      %v1286 = vmul.f32 %v1285, %v1218
      %v1287 = vmul.f32 %v1286, %v1285
      %v1288 = vmul.f32 0.5, %v1287
      %v1289 = vsub.f32 1.5, %v1288
      %v1290 = vmul.f32 %v1285, %v1289
      %v1291 = vmul.f32 %v1218, %v1290
      %vm1292 = vcmp.eq.f32.partialorder %v1218, inf
      %v1293 = vsel %vm1292, %v1218, %v1291
      %vm1294 = vcmp.eq.f32.partialorder %v1218, 0.0
      %v1295 = vand.u32 %v1218, 2147483648
      %v1296 = vsel %vm1294, %v1295, %v1293
      %v1297 = vrsqrt.pop %v1221
      %v1298 = vmul.f32 %v1297, %v1221
      %v1299 = vmul.f32 %v1298, %v1297
      %v1300 = vmul.f32 0.5, %v1299
      %v1301 = vsub.f32 1.5, %v1300
      %v1302 = vmul.f32 %v1297, %v1301
      %v1303 = vmul.f32 %v1221, %v1302
      %vm1304 = vcmp.eq.f32.partialorder %v1221, inf
      %v1305 = vsel %vm1304, %v1221, %v1303
      %vm1306 = vcmp.eq.f32.partialorder %v1221, 0.0
      %v1307 = vand.u32 %v1221, 2147483648
      %v1308 = vsel %vm1306, %v1307, %v1305
      %v1309 = vrsqrt.pop %v1224
      %v1310 = vmul.f32 %v1309, %v1224
      %v1311 = vmul.f32 %v1310, %v1309
      %v1312 = vmul.f32 0.5, %v1311
      %v1313 = vsub.f32 1.5, %v1312
      %v1314 = vmul.f32 %v1309, %v1313
      %v1315 = vmul.f32 %v1224, %v1314
      %vm1316 = vcmp.eq.f32.partialorder %v1224, inf
      %v1317 = vsel %vm1316, %v1224, %v1315
      %vm1318 = vcmp.eq.f32.partialorder %v1224, 0.0
      %v1319 = vand.u32 %v1224, 2147483648
      %v1320 = vsel %vm1318, %v1319, %v1317
      %v1321 = vmax.f32 %v1236, 1e-12
      %v1322 = vmax.f32 %v1248, 1e-12
      %v1323 = vmax.f32 %v1260, 1e-12
      %v1324 = vmax.f32 %v1272, 1e-12
      %v1325 = vmax.f32 %v1284, 1e-12
      %v1326 = vmax.f32 %v1296, 1e-12
      %v1327 = vmax.f32 %v1308, 1e-12
      %v1328 = vmax.f32 %v1320, 1e-12
      %v1329 = vrcp.pop %v1321
      %v1330 = vmul.f32 %v1321, %v1329
      %v1331 = vsub.f32 1.0, %v1330
      %v1332 = vmul.f32 %v1329, %v1331
      %v1333 = vadd.f32 %v1329, %v1332
      %vm1334 = vweird.f32 %v1321
      %vm1335 = vweird.f32 %v1329
      %vm1336 = vmor %vm1334, %vm1335
      %v1337 = vsel %vm1336, %v1329, %v1333
      %v1338 = vand.u32 2147483647, %v1321
      %vm1339 = vcmp.eq.f32.partialorder %v1338, 8.507059e+37
      %v1340 = vand.u32 %v1321, 2147483648
      %v1341 = vor.u32 1.1754944e-38, %v1340
      %v1342 = vsel %vm1339, %v1341, %v1337
      %v1343 = vmul.f32 %v288, %v1342
      %v1344 = vrcp.pop %v1322
      %v1345 = vmul.f32 %v1322, %v1344
      %v1346 = vsub.f32 1.0, %v1345
      %v1347 = vmul.f32 %v1344, %v1346
      %v1348 = vadd.f32 %v1344, %v1347
      %vm1349 = vweird.f32 %v1322
      %vm1350 = vweird.f32 %v1344
      %vm1351 = vmor %vm1349, %vm1350
      %v1352 = vsel %vm1351, %v1344, %v1348
      %v1353 = vand.u32 2147483647, %v1322
      %vm1354 = vcmp.eq.f32.partialorder %v1353, 8.507059e+37
      %v1355 = vand.u32 %v1322, 2147483648
      %v1356 = vor.u32 1.1754944e-38, %v1355
      %v1357 = vsel %vm1354, %v1356, %v1352
      %v1358 = vmul.f32 %v289, %v1357
      %v1359 = vrcp.pop %v1323
      %v1360 = vmul.f32 %v1323, %v1359
      %v1361 = vsub.f32 1.0, %v1360
      %v1362 = vmul.f32 %v1359, %v1361
      %v1363 = vadd.f32 %v1359, %v1362
      %vm1364 = vweird.f32 %v1323
      %vm1365 = vweird.f32 %v1359
      %vm1366 = vmor %vm1364, %vm1365
      %v1367 = vsel %vm1366, %v1359, %v1363
      %v1368 = vand.u32 2147483647, %v1323
      %vm1369 = vcmp.eq.f32.partialorder %v1368, 8.507059e+37
      %v1370 = vand.u32 %v1323, 2147483648
      %v1371 = vor.u32 1.1754944e-38, %v1370
      %v1372 = vsel %vm1369, %v1371, %v1367
      %v1373 = vmul.f32 %v290, %v1372
      %v1374 = vrcp.pop %v1324
      %v1375 = vmul.f32 %v1324, %v1374
      %v1376 = vsub.f32 1.0, %v1375
      %v1377 = vmul.f32 %v1374, %v1376
      %v1378 = vadd.f32 %v1374, %v1377
      %vm1379 = vweird.f32 %v1324
      %vm1380 = vweird.f32 %v1374
      %vm1381 = vmor %vm1379, %vm1380
      %v1382 = vsel %vm1381, %v1374, %v1378
      %v1383 = vand.u32 2147483647, %v1324
      %vm1384 = vcmp.eq.f32.partialorder %v1383, 8.507059e+37
      %v1385 = vand.u32 %v1324, 2147483648
      %v1386 = vor.u32 1.1754944e-38, %v1385
      %v1387 = vsel %vm1384, %v1386, %v1382
      %v1388 = vmul.f32 %v291, %v1387
      %v1389 = vrcp.pop %v1325
      %v1390 = vmul.f32 %v1325, %v1389
      %v1391 = vsub.f32 1.0, %v1390
      %v1392 = vmul.f32 %v1389, %v1391
      %v1393 = vadd.f32 %v1389, %v1392
      %vm1394 = vweird.f32 %v1325
      %vm1395 = vweird.f32 %v1389
      %vm1396 = vmor %vm1394, %vm1395
      %v1397 = vsel %vm1396, %v1389, %v1393
      %v1398 = vand.u32 2147483647, %v1325
      %vm1399 = vcmp.eq.f32.partialorder %v1398, 8.507059e+37
      %v1400 = vand.u32 %v1325, 2147483648
      %v1401 = vor.u32 1.1754944e-38, %v1400
      %v1402 = vsel %vm1399, %v1401, %v1397
      %v1403 = vmul.f32 %v292, %v1402
      %v1404 = vrcp.pop %v1326
      %v1405 = vmul.f32 %v1326, %v1404
      %v1406 = vsub.f32 1.0, %v1405
      %v1407 = vmul.f32 %v1404, %v1406
      %v1408 = vadd.f32 %v1404, %v1407
      %vm1409 = vweird.f32 %v1326
      %vm1410 = vweird.f32 %v1404
      %vm1411 = vmor %vm1409, %vm1410
      %v1412 = vsel %vm1411, %v1404, %v1408
      %v1413 = vand.u32 2147483647, %v1326
      %vm1414 = vcmp.eq.f32.partialorder %v1413, 8.507059e+37
      %v1415 = vand.u32 %v1326, 2147483648
      %v1416 = vor.u32 1.1754944e-38, %v1415
      %v1417 = vsel %vm1414, %v1416, %v1412
      %v1418 = vmul.f32 %v293, %v1417
      %v1419 = vrcp.pop %v1327
      %v1420 = vmul.f32 %v1327, %v1419
      %v1421 = vsub.f32 1.0, %v1420
      %v1422 = vmul.f32 %v1419, %v1421
      %v1423 = vadd.f32 %v1419, %v1422
      %vm1424 = vweird.f32 %v1327
      %vm1425 = vweird.f32 %v1419
      %vm1426 = vmor %vm1424, %vm1425
      %v1427 = vsel %vm1426, %v1419, %v1423
      %v1428 = vand.u32 2147483647, %v1327
      %vm1429 = vcmp.eq.f32.partialorder %v1428, 8.507059e+37
      %v1430 = vand.u32 %v1327, 2147483648
      %v1431 = vor.u32 1.1754944e-38, %v1430
      %v1432 = vsel %vm1429, %v1431, %v1427
      %v1433 = vmul.f32 %v294, %v1432
      %v1434 = vrcp.pop %v1328
      %v1435 = vmul.f32 %v1328, %v1434
      %v1436 = vsub.f32 1.0, %v1435
      %v1437 = vmul.f32 %v1434, %v1436
      %v1438 = vadd.f32 %v1434, %v1437
      %vm1439 = vweird.f32 %v1328
      %vm1440 = vweird.f32 %v1434
      %vm1441 = vmor %vm1439, %vm1440
      %v1442 = vsel %vm1441, %v1434, %v1438
      %v1443 = vand.u32 2147483647, %v1328
      %vm1444 = vcmp.eq.f32.partialorder %v1443, 8.507059e+37
      %v1445 = vand.u32 %v1328, 2147483648
      %v1446 = vor.u32 1.1754944e-38, %v1445
      %v1447 = vsel %vm1444, %v1446, %v1442
      %v1448 = vmul.f32 %v295, %v1447
      %v1449 = vpack.c.bf16 %v1358, %v1343
      %v1450 = vpack.c.bf16 %v1388, %v1373
      %v1451 = vpack.c.bf16 %v1418, %v1403
      %v1452 = vpack.c.bf16 %v1448, %v1433
      %v1453 = vmul.f32 %v1192, %v1192
      %v1454 = vrot.slane %v1453, 4
      %v1455 = vadd.f32 %v1453, %v1454
      %v1456 = vrot.slane %v1455, 2
      %v1457 = vadd.f32 %v1455, %v1456
      %v1458 = vrot.slane %v1457, 1
      %v1459 = vadd.f32 %v1457, %v1458
      %v1460 = vrsqrt.pop %v1459
      %v1461 = vmul.f32 %v1460, %v1459
      %v1462 = vmul.f32 %v1461, %v1460
      %v1463 = vmul.f32 0.5, %v1462
      %v1464 = vsub.f32 1.5, %v1463
      %v1465 = vmul.f32 %v1460, %v1464
      %v1466 = vmul.f32 %v1459, %v1465
      %vm1467 = vcmp.eq.f32.partialorder %v1459, inf
      %v1468 = vsel %vm1467, %v1459, %v1466
      %vm1469 = vcmp.eq.f32.partialorder %v1459, 0.0
      %v1470 = vand.u32 %v1459, 2147483648
      %v1471 = vsel %vm1469, %v1470, %v1468
      %v1472 = vmax.f32 %v1471, 1e-12
      %v1473 = vrcp.pop %v1472
      %v1474 = vmul.f32 %v1472, %v1473
      %v1475 = vsub.f32 1.0, %v1474
      %v1476 = vmul.f32 %v1473, %v1475
      %v1477 = vadd.f32 %v1473, %v1476
      %vm1478 = vweird.f32 %v1472
      %vm1479 = vweird.f32 %v1473
      %vm1480 = vmor %vm1478, %vm1479
      %v1481 = vsel %vm1480, %v1473, %v1477
      %v1482 = vand.u32 2147483647, %v1472
      %vm1483 = vcmp.eq.f32.partialorder %v1482, 8.507059e+37
      %v1484 = vand.u32 %v1472, 2147483648
      %v1485 = vor.u32 1.1754944e-38, %v1484
      %v1486 = vsel %vm1483, %v1485, %v1481
      %v1487 = vmul.f32 %v1192, %v1486
      %v1488 = vpack.c.bf16 %v1487, %v1487
      %v1490 = vsel %vm337, %v1449, 0
      %v1493 = vsel %vm337, %v1450, 0
      %v1496 = vsel %vm337, %v1451, 0
      %v1499 = vsel %vm337, %v1452, 0
      %v1502 = vsel %vm902, %v1488, 0
      %1504 = vmatpush.bf16.msra.mxu0 0
      %1505 = vmatpush.bf16.msra.mxu0 0
      %1506 = vmatpush.bf16.msra.mxu0 0
      %1507 = vmatpush.bf16.msra.mxu0 0
      %1508 = vmatpush.bf16.msra.mxu0 0
      %1509 = vmatpush.bf16.msra.mxu0 0
      %1510 = vmatpush.bf16.msra.mxu0 0
      %1511 = vmatpush.bf16.msra.mxu0 %v1502
      %1512 = vmatmul.bf16.gmra.mxu0 %v1490
      %v1513 = vpop.f32.mrf.mxu0
      %v1514 = vadd.f32 0.0, %v1513
      %v1515 = vpop.f32.mrf.mxu0
      %v1516 = vadd.f32 0.0, %v1515
      %1517 = vmatmul.bf16.gmra.mxu0 %v1493
      %v1518 = vpop.f32.mrf.mxu0
      %v1519 = vadd.f32 0.0, %v1518
      %v1520 = vpop.f32.mrf.mxu0
      %v1521 = vadd.f32 0.0, %v1520
      %1522 = vmatmul.bf16.gmra.mxu0 %v1496
      %v1523 = vpop.f32.mrf.mxu0
      %v1524 = vadd.f32 0.0, %v1523
      %v1525 = vpop.f32.mrf.mxu0
      %v1526 = vadd.f32 0.0, %v1525
      %1527 = vmatmul.bf16.gmra.mxu0 %v1499
      %v1528 = vpop.f32.mrf.mxu0
      %v1529 = vadd.f32 0.0, %v1528
      %v1530 = vpop.f32.mrf.mxu0
      %v1531 = vadd.f32 0.0, %v1530
      %1532 = vdwg.mxu0
      %v1533 = vmul.f32 %v1514, %v1514
      %v1534 = vmul.f32 %v1516, %v1516
      %v1535 = vmul.f32 %v1519, %v1519
      %v1536 = vmul.f32 %v1521, %v1521
      %v1537 = vmul.f32 %v1524, %v1524
      %v1538 = vmul.f32 %v1526, %v1526
      %v1539 = vmul.f32 %v1529, %v1529
      %v1540 = vmul.f32 %v1531, %v1531
      %1541 = vadd.xlane.f32.xlu0 %v1514
      %v1542 = vpop.xlane.xlu0 %1541
      %1543 = vadd.xlane.f32.xlu0 %v1516
      %v1544 = vpop.xlane.xlu0 %1543
      %1545 = vadd.xlane.f32.xlu0 %v1519
      %v1546 = vpop.xlane.xlu0 %1545
      %1547 = vadd.xlane.f32.xlu0 %v1521
      %v1548 = vpop.xlane.xlu0 %1547
      %1549 = vadd.xlane.f32.xlu0 %v1524
      %v1550 = vpop.xlane.xlu0 %1549
      %1551 = vadd.xlane.f32.xlu0 %v1526
      %v1552 = vpop.xlane.xlu0 %1551
      %1553 = vadd.xlane.f32.xlu0 %v1529
      %v1554 = vpop.xlane.xlu0 %1553
      %1555 = vadd.xlane.f32.xlu0 %v1531
      %v1556 = vpop.xlane.xlu0 %1555
      %1557 = vadd.xlane.f32.xlu0 %v1533
      %v1558 = vpop.xlane.xlu0 %1557
      %1559 = vadd.xlane.f32.xlu0 %v1534
      %v1560 = vpop.xlane.xlu0 %1559
      %1561 = vadd.xlane.f32.xlu0 %v1535
      %v1562 = vpop.xlane.xlu0 %1561
      %1563 = vadd.xlane.f32.xlu0 %v1536
      %v1564 = vpop.xlane.xlu0 %1563
      %1565 = vadd.xlane.f32.xlu0 %v1537
      %v1566 = vpop.xlane.xlu0 %1565
      %1567 = vadd.xlane.f32.xlu0 %v1538
      %v1568 = vpop.xlane.xlu0 %1567
      %1569 = vadd.xlane.f32.xlu0 %v1539
      %v1570 = vpop.xlane.xlu0 %1569
      %1571 = vadd.xlane.f32.xlu0 %v1540
      %v1572 = vpop.xlane.xlu0 %1571
      %v1573 = vmul.f32 %v1542, 0.0078125
      %v1574 = vmul.f32 %v1544, 0.0078125
      %v1575 = vmul.f32 %v1546, 0.0078125
      %v1576 = vmul.f32 %v1548, 0.0078125
      %v1577 = vmul.f32 %v1550, 0.0078125
      %v1578 = vmul.f32 %v1552, 0.0078125
      %v1579 = vmul.f32 %v1554, 0.0078125
      %v1580 = vmul.f32 %v1556, 0.0078125
      %v1581 = vmul.f32 %v1542, %v1573
      %v1582 = vmul.f32 %v1544, %v1574
      %v1583 = vmul.f32 %v1546, %v1575
      %v1584 = vmul.f32 %v1548, %v1576
      %v1585 = vmul.f32 %v1550, %v1577
      %v1586 = vmul.f32 %v1552, %v1578
      %v1587 = vmul.f32 %v1554, %v1579
      %v1588 = vmul.f32 %v1556, %v1580
      %v1589 = vsub.f32 %v1558, %v1581
      %v1590 = vsub.f32 %v1560, %v1582
      %v1591 = vsub.f32 %v1562, %v1583
      %v1592 = vsub.f32 %v1564, %v1584
      %v1593 = vsub.f32 %v1566, %v1585
      %v1594 = vsub.f32 %v1568, %v1586
      %v1595 = vsub.f32 %v1570, %v1587
      %v1596 = vsub.f32 %v1572, %v1588
      %v1597 = vmax.f32 %v1589, 0.0
      %v1598 = vmax.f32 %v1590, 0.0
      %v1599 = vmax.f32 %v1591, 0.0
      %v1600 = vmax.f32 %v1592, 0.0
      %v1601 = vmax.f32 %v1593, 0.0
      %v1602 = vmax.f32 %v1594, 0.0
      %v1603 = vmax.f32 %v1595, 0.0
      %v1604 = vmax.f32 %v1596, 0.0
      %v1605 = vmul.f32 %v1597, 0.007874016
      %v1606 = vmul.f32 %v1598, 0.007874016
      %v1607 = vmul.f32 %v1599, 0.007874016
      %v1608 = vmul.f32 %v1600, 0.007874016
      %v1609 = vmul.f32 %v1601, 0.007874016
      %v1610 = vmul.f32 %v1602, 0.007874016
      %v1611 = vmul.f32 %v1603, 0.007874016
      %v1612 = vmul.f32 %v1604, 0.007874016
      %v1613 = vrsqrt.pop %v1605
      %v1614 = vmul.f32 %v1613, %v1605
      %v1615 = vmul.f32 %v1614, %v1613
      %v1616 = vmul.f32 0.5, %v1615
      %v1617 = vsub.f32 1.5, %v1616
      %v1618 = vmul.f32 %v1613, %v1617
      %v1619 = vmul.f32 %v1605, %v1618
      %vm1620 = vcmp.eq.f32.partialorder %v1605, inf
      %v1621 = vsel %vm1620, %v1605, %v1619
      %vm1622 = vcmp.eq.f32.partialorder %v1605, 0.0
      %v1623 = vand.u32 %v1605, 2147483648
      %v1624 = vsel %vm1622, %v1623, %v1621
      %v1625 = vrsqrt.pop %v1606
      %v1626 = vmul.f32 %v1625, %v1606
      %v1627 = vmul.f32 %v1626, %v1625
      %v1628 = vmul.f32 0.5, %v1627
      %v1629 = vsub.f32 1.5, %v1628
      %v1630 = vmul.f32 %v1625, %v1629
      %v1631 = vmul.f32 %v1606, %v1630
      %vm1632 = vcmp.eq.f32.partialorder %v1606, inf
      %v1633 = vsel %vm1632, %v1606, %v1631
      %vm1634 = vcmp.eq.f32.partialorder %v1606, 0.0
      %v1635 = vand.u32 %v1606, 2147483648
      %v1636 = vsel %vm1634, %v1635, %v1633
      %v1637 = vrsqrt.pop %v1607
      %v1638 = vmul.f32 %v1637, %v1607
      %v1639 = vmul.f32 %v1638, %v1637
      %v1640 = vmul.f32 0.5, %v1639
      %v1641 = vsub.f32 1.5, %v1640
      %v1642 = vmul.f32 %v1637, %v1641
      %v1643 = vmul.f32 %v1607, %v1642
      %vm1644 = vcmp.eq.f32.partialorder %v1607, inf
      %v1645 = vsel %vm1644, %v1607, %v1643
      %vm1646 = vcmp.eq.f32.partialorder %v1607, 0.0
      %v1647 = vand.u32 %v1607, 2147483648
      %v1648 = vsel %vm1646, %v1647, %v1645
      %v1649 = vrsqrt.pop %v1608
      %v1650 = vmul.f32 %v1649, %v1608
      %v1651 = vmul.f32 %v1650, %v1649
      %v1652 = vmul.f32 0.5, %v1651
      %v1653 = vsub.f32 1.5, %v1652
      %v1654 = vmul.f32 %v1649, %v1653
      %v1655 = vmul.f32 %v1608, %v1654
      %vm1656 = vcmp.eq.f32.partialorder %v1608, inf
      %v1657 = vsel %vm1656, %v1608, %v1655
      %vm1658 = vcmp.eq.f32.partialorder %v1608, 0.0
      %v1659 = vand.u32 %v1608, 2147483648
      %v1660 = vsel %vm1658, %v1659, %v1657
      %v1661 = vrsqrt.pop %v1609
      %v1662 = vmul.f32 %v1661, %v1609
      %v1663 = vmul.f32 %v1662, %v1661
      %v1664 = vmul.f32 0.5, %v1663
      %v1665 = vsub.f32 1.5, %v1664
      %v1666 = vmul.f32 %v1661, %v1665
      %v1667 = vmul.f32 %v1609, %v1666
      %vm1668 = vcmp.eq.f32.partialorder %v1609, inf
      %v1669 = vsel %vm1668, %v1609, %v1667
      %vm1670 = vcmp.eq.f32.partialorder %v1609, 0.0
      %v1671 = vand.u32 %v1609, 2147483648
      %v1672 = vsel %vm1670, %v1671, %v1669
      %v1673 = vrsqrt.pop %v1610
      %v1674 = vmul.f32 %v1673, %v1610
      %v1675 = vmul.f32 %v1674, %v1673
      %v1676 = vmul.f32 0.5, %v1675
      %v1677 = vsub.f32 1.5, %v1676
      %v1678 = vmul.f32 %v1673, %v1677
      %v1679 = vmul.f32 %v1610, %v1678
      %vm1680 = vcmp.eq.f32.partialorder %v1610, inf
      %v1681 = vsel %vm1680, %v1610, %v1679
      %vm1682 = vcmp.eq.f32.partialorder %v1610, 0.0
      %v1683 = vand.u32 %v1610, 2147483648
      %v1684 = vsel %vm1682, %v1683, %v1681
      %v1685 = vrsqrt.pop %v1611
      %v1686 = vmul.f32 %v1685, %v1611
      %v1687 = vmul.f32 %v1686, %v1685
      %v1688 = vmul.f32 0.5, %v1687
      %v1689 = vsub.f32 1.5, %v1688
      %v1690 = vmul.f32 %v1685, %v1689
      %v1691 = vmul.f32 %v1611, %v1690
      %vm1692 = vcmp.eq.f32.partialorder %v1611, inf
      %v1693 = vsel %vm1692, %v1611, %v1691
      %vm1694 = vcmp.eq.f32.partialorder %v1611, 0.0
      %v1695 = vand.u32 %v1611, 2147483648
      %v1696 = vsel %vm1694, %v1695, %v1693
      %v1697 = vrsqrt.pop %v1612
      %v1698 = vmul.f32 %v1697, %v1612
      %v1699 = vmul.f32 %v1698, %v1697
      %v1700 = vmul.f32 0.5, %v1699
      %v1701 = vsub.f32 1.5, %v1700
      %v1702 = vmul.f32 %v1697, %v1701
      %v1703 = vmul.f32 %v1612, %v1702
      %vm1704 = vcmp.eq.f32.partialorder %v1612, inf
      %v1705 = vsel %vm1704, %v1612, %v1703
      %vm1706 = vcmp.eq.f32.partialorder %v1612, 0.0
      %v1707 = vand.u32 %v1612, 2147483648
      %v1708 = vsel %vm1706, %v1707, %v1705
      %v1709 = vadd.f32 %v1624, 1e-10
      %v1710 = vadd.f32 %v1636, 1e-10
      %v1711 = vadd.f32 %v1648, 1e-10
      %v1712 = vadd.f32 %v1660, 1e-10
      %v1713 = vadd.f32 %v1672, 1e-10
      %v1714 = vadd.f32 %v1684, 1e-10
      %v1715 = vadd.f32 %v1696, 1e-10
      %v1716 = vadd.f32 %v1708, 1e-10
      %1717 = vmax.xlane.f32.xlu0 %v1514
      %v1718 = vpop.xlane.xlu0 %1717
      %1719 = vmax.xlane.f32.xlu0 %v1516
      %v1720 = vpop.xlane.xlu0 %1719
      %1721 = vmax.xlane.f32.xlu0 %v1519
      %v1722 = vpop.xlane.xlu0 %1721
      %1723 = vmax.xlane.f32.xlu0 %v1521
      %v1724 = vpop.xlane.xlu0 %1723
      %1725 = vmax.xlane.f32.xlu0 %v1524
      %v1726 = vpop.xlane.xlu0 %1725
      %1727 = vmax.xlane.f32.xlu0 %v1526
      %v1728 = vpop.xlane.xlu0 %1727
      %1729 = vmax.xlane.f32.xlu0 %v1529
      %v1730 = vpop.xlane.xlu0 %1729
      %1731 = vmax.xlane.f32.xlu0 %v1531
      %v1732 = vpop.xlane.xlu0 %1731
      %v1733 = vsub.f32 %v1514, %v1718
      %v1734 = vsub.f32 %v1516, %v1720
      %v1735 = vsub.f32 %v1519, %v1722
      %v1736 = vsub.f32 %v1521, %v1724
      %v1737 = vsub.f32 %v1524, %v1726
      %v1738 = vsub.f32 %v1526, %v1728
      %v1739 = vsub.f32 %v1529, %v1730
      %v1740 = vsub.f32 %v1531, %v1732
      %v1741 = vrcp.pop %v1709
      %v1742 = vmul.f32 %v1709, %v1741
      %v1743 = vsub.f32 1.0, %v1742
      %v1744 = vmul.f32 %v1741, %v1743
      %v1745 = vadd.f32 %v1741, %v1744
      %vm1746 = vweird.f32 %v1709
      %vm1747 = vweird.f32 %v1741
      %vm1748 = vmor %vm1746, %vm1747
      %v1749 = vsel %vm1748, %v1741, %v1745
      %v1750 = vand.u32 2147483647, %v1709
      %vm1751 = vcmp.eq.f32.partialorder %v1750, 8.507059e+37
      %v1752 = vand.u32 %v1709, 2147483648
      %v1753 = vor.u32 1.1754944e-38, %v1752
      %v1754 = vsel %vm1751, %v1753, %v1749
      %v1755 = vmul.f32 1.0, %v1754
      %v1756 = vrcp.pop %v1710
      %v1757 = vmul.f32 %v1710, %v1756
      %v1758 = vsub.f32 1.0, %v1757
      %v1759 = vmul.f32 %v1756, %v1758
      %v1760 = vadd.f32 %v1756, %v1759
      %vm1761 = vweird.f32 %v1710
      %vm1762 = vweird.f32 %v1756
      %vm1763 = vmor %vm1761, %vm1762
      %v1764 = vsel %vm1763, %v1756, %v1760
      %v1765 = vand.u32 2147483647, %v1710
      %vm1766 = vcmp.eq.f32.partialorder %v1765, 8.507059e+37
      %v1767 = vand.u32 %v1710, 2147483648
      %v1768 = vor.u32 1.1754944e-38, %v1767
      %v1769 = vsel %vm1766, %v1768, %v1764
      %v1770 = vmul.f32 1.0, %v1769
      %v1771 = vrcp.pop %v1711
      %v1772 = vmul.f32 %v1711, %v1771
      %v1773 = vsub.f32 1.0, %v1772
      %v1774 = vmul.f32 %v1771, %v1773
      %v1775 = vadd.f32 %v1771, %v1774
      %vm1776 = vweird.f32 %v1711
      %vm1777 = vweird.f32 %v1771
      %vm1778 = vmor %vm1776, %vm1777
      %v1779 = vsel %vm1778, %v1771, %v1775
      %v1780 = vand.u32 2147483647, %v1711
      %vm1781 = vcmp.eq.f32.partialorder %v1780, 8.507059e+37
      %v1782 = vand.u32 %v1711, 2147483648
      %v1783 = vor.u32 1.1754944e-38, %v1782
      %v1784 = vsel %vm1781, %v1783, %v1779
      %v1785 = vmul.f32 1.0, %v1784
      %v1786 = vrcp.pop %v1712
      %v1787 = vmul.f32 %v1712, %v1786
      %v1788 = vsub.f32 1.0, %v1787
      %v1789 = vmul.f32 %v1786, %v1788
      %v1790 = vadd.f32 %v1786, %v1789
      %vm1791 = vweird.f32 %v1712
      %vm1792 = vweird.f32 %v1786
      %vm1793 = vmor %vm1791, %vm1792
      %v1794 = vsel %vm1793, %v1786, %v1790
      %v1795 = vand.u32 2147483647, %v1712
      %vm1796 = vcmp.eq.f32.partialorder %v1795, 8.507059e+37
      %v1797 = vand.u32 %v1712, 2147483648
      %v1798 = vor.u32 1.1754944e-38, %v1797
      %v1799 = vsel %vm1796, %v1798, %v1794
      %v1800 = vmul.f32 1.0, %v1799
      %v1801 = vrcp.pop %v1713
      %v1802 = vmul.f32 %v1713, %v1801
      %v1803 = vsub.f32 1.0, %v1802
      %v1804 = vmul.f32 %v1801, %v1803
      %v1805 = vadd.f32 %v1801, %v1804
      %vm1806 = vweird.f32 %v1713
      %vm1807 = vweird.f32 %v1801
      %vm1808 = vmor %vm1806, %vm1807
      %v1809 = vsel %vm1808, %v1801, %v1805
      %v1810 = vand.u32 2147483647, %v1713
      %vm1811 = vcmp.eq.f32.partialorder %v1810, 8.507059e+37
      %v1812 = vand.u32 %v1713, 2147483648
      %v1813 = vor.u32 1.1754944e-38, %v1812
      %v1814 = vsel %vm1811, %v1813, %v1809
      %v1815 = vmul.f32 1.0, %v1814
      %v1816 = vrcp.pop %v1714
      %v1817 = vmul.f32 %v1714, %v1816
      %v1818 = vsub.f32 1.0, %v1817
      %v1819 = vmul.f32 %v1816, %v1818
      %v1820 = vadd.f32 %v1816, %v1819
      %vm1821 = vweird.f32 %v1714
      %vm1822 = vweird.f32 %v1816
      %vm1823 = vmor %vm1821, %vm1822
      %v1824 = vsel %vm1823, %v1816, %v1820
      %v1825 = vand.u32 2147483647, %v1714
      %vm1826 = vcmp.eq.f32.partialorder %v1825, 8.507059e+37
      %v1827 = vand.u32 %v1714, 2147483648
      %v1828 = vor.u32 1.1754944e-38, %v1827
      %v1829 = vsel %vm1826, %v1828, %v1824
      %v1830 = vmul.f32 1.0, %v1829
      %v1831 = vrcp.pop %v1715
      %v1832 = vmul.f32 %v1715, %v1831
      %v1833 = vsub.f32 1.0, %v1832
      %v1834 = vmul.f32 %v1831, %v1833
      %v1835 = vadd.f32 %v1831, %v1834
      %vm1836 = vweird.f32 %v1715
      %vm1837 = vweird.f32 %v1831
      %vm1838 = vmor %vm1836, %vm1837
      %v1839 = vsel %vm1838, %v1831, %v1835
      %v1840 = vand.u32 2147483647, %v1715
      %vm1841 = vcmp.eq.f32.partialorder %v1840, 8.507059e+37
      %v1842 = vand.u32 %v1715, 2147483648
      %v1843 = vor.u32 1.1754944e-38, %v1842
      %v1844 = vsel %vm1841, %v1843, %v1839
      %v1845 = vmul.f32 1.0, %v1844
      %v1846 = vrcp.pop %v1716
      %v1847 = vmul.f32 %v1716, %v1846
      %v1848 = vsub.f32 1.0, %v1847
      %v1849 = vmul.f32 %v1846, %v1848
      %v1850 = vadd.f32 %v1846, %v1849
      %vm1851 = vweird.f32 %v1716
      %vm1852 = vweird.f32 %v1846
      %vm1853 = vmor %vm1851, %vm1852
      %v1854 = vsel %vm1853, %v1846, %v1850
      %v1855 = vand.u32 2147483647, %v1716
      %vm1856 = vcmp.eq.f32.partialorder %v1855, 8.507059e+37
      %v1857 = vand.u32 %v1716, 2147483648
      %v1858 = vor.u32 1.1754944e-38, %v1857
      %v1859 = vsel %vm1856, %v1858, %v1854
      %v1860 = vmul.f32 1.0, %v1859
      %v1861 = vmul.f32 %v1733, %v1755
      %v1862 = vmul.f32 %v1734, %v1770
      %v1863 = vmul.f32 %v1735, %v1785
      %v1864 = vmul.f32 %v1736, %v1800
      %v1865 = vmul.f32 %v1737, %v1815
      %v1866 = vmul.f32 %v1738, %v1830
      %v1867 = vmul.f32 %v1739, %v1845
      %v1868 = vmul.f32 %v1740, %v1860
      %v1869 = vmul.f32 %v1861, 1.442695
      %v1870 = vpow.pop %v1869
      %v1871 = vmul.f32 %v1862, 1.442695
      %v1872 = vpow.pop %v1871
      %v1873 = vmul.f32 %v1863, 1.442695
      %v1874 = vpow.pop %v1873
      %v1875 = vmul.f32 %v1864, 1.442695
      %v1876 = vpow.pop %v1875
      %v1877 = vmul.f32 %v1865, 1.442695
      %v1878 = vpow.pop %v1877
      %v1879 = vmul.f32 %v1866, 1.442695
      %v1880 = vpow.pop %v1879
      %v1881 = vmul.f32 %v1867, 1.442695
      %v1882 = vpow.pop %v1881
      %v1883 = vmul.f32 %v1868, 1.442695
      %v1884 = vpow.pop %v1883
      %1885 = vadd.xlane.f32.xlu0 %v1870
      %v1886 = vpop.xlane.xlu0 %1885
      %1887 = vadd.xlane.f32.xlu0 %v1872
      %v1888 = vpop.xlane.xlu0 %1887
      %1889 = vadd.xlane.f32.xlu0 %v1874
      %v1890 = vpop.xlane.xlu0 %1889
      %1891 = vadd.xlane.f32.xlu0 %v1876
      %v1892 = vpop.xlane.xlu0 %1891
      %1893 = vadd.xlane.f32.xlu0 %v1878
      %v1894 = vpop.xlane.xlu0 %1893
      %1895 = vadd.xlane.f32.xlu0 %v1880
      %v1896 = vpop.xlane.xlu0 %1895
      %1897 = vadd.xlane.f32.xlu0 %v1882
      %v1898 = vpop.xlane.xlu0 %1897
      %1899 = vadd.xlane.f32.xlu0 %v1884
      %v1900 = vpop.xlane.xlu0 %1899
      %v1901 = vrcp.pop %v1886
      %v1902 = vrcp.pop %v1888
      %v1903 = vrcp.pop %v1890
      %v1904 = vrcp.pop %v1892
      %v1905 = vrcp.pop %v1894
      %v1906 = vrcp.pop %v1896
      %v1907 = vrcp.pop %v1898
      %v1908 = vrcp.pop %v1900
      %v1909 = vadd.f32 %v1514, %v1516
      %v1910 = vadd.f32 %v1909, %v1519
      %v1911 = vadd.f32 %v1910, %v1521
      %v1912 = vadd.f32 %v1911, %v1524
      %v1913 = vadd.f32 %v1912, %v1526
      %v1914 = vadd.f32 %v1913, %v1529
      %v1915 = vadd.f32 %v1914, %v1531
      %v1916 = vrot.slane %v1915, 4
      %v1917 = vadd.f32 %v1915, %v1916
      %v1918 = vrot.slane %v1917, 2
      %v1919 = vadd.f32 %v1917, %v1918
      %v1920 = vrot.slane %v1919, 1
      %v1921 = vadd.f32 %v1919, %v1920
      %v1922 = vadd.f32 %v1533, %v1534
      %v1923 = vadd.f32 %v1922, %v1535
      %v1924 = vadd.f32 %v1923, %v1536
      %v1925 = vadd.f32 %v1924, %v1537
      %v1926 = vadd.f32 %v1925, %v1538
      %v1927 = vadd.f32 %v1926, %v1539
      %v1928 = vadd.f32 %v1927, %v1540
      %v1929 = vrot.slane %v1928, 4
      %v1930 = vadd.f32 %v1928, %v1929
      %v1931 = vrot.slane %v1930, 2
      %v1932 = vadd.f32 %v1930, %v1931
      %v1933 = vrot.slane %v1932, 1
      %v1934 = vadd.f32 %v1932, %v1933
      %v1935 = vmul.f32 %v1921, 0.015625
      %v1936 = vmul.f32 %v1921, %v1935
      %v1937 = vsub.f32 %v1934, %v1936
      %v1938 = vmax.f32 %v1937, 0.0
      %v1939 = vmul.f32 %v1938, 0.015873017
      %v1940 = vrsqrt.pop %v1939
      %v1941 = vmul.f32 %v1940, %v1939
      %v1942 = vmul.f32 %v1941, %v1940
      %v1943 = vmul.f32 0.5, %v1942
      %v1944 = vsub.f32 1.5, %v1943
      %v1945 = vmul.f32 %v1940, %v1944
      %v1946 = vmul.f32 %v1939, %v1945
      %vm1947 = vcmp.eq.f32.partialorder %v1939, inf
      %v1948 = vsel %vm1947, %v1939, %v1946
      %vm1949 = vcmp.eq.f32.partialorder %v1939, 0.0
      %v1950 = vand.u32 %v1939, 2147483648
      %v1951 = vsel %vm1949, %v1950, %v1948
      %v1952 = vadd.f32 %v1951, 1e-10
      %v1953 = vmax.f32 %v1514, %v1524
      %v1954 = vmax.f32 %v1516, %v1526
      %v1955 = vmax.f32 %v1519, %v1529
      %v1956 = vmax.f32 %v1521, %v1531
      %v1957 = vmax.f32 %v1953, %v1954
      %v1958 = vmax.f32 %v1955, %v1956
      %v1959 = vmax.f32 %v1957, %v1958
      %v1960 = vrot.slane %v1959, 4
      %v1961 = vmax.f32 %v1959, %v1960
      %v1962 = vrot.slane %v1961, 2
      %v1963 = vmax.f32 %v1961, %v1962
      %v1964 = vrot.slane %v1963, 1
      %v1965 = vmax.f32 %v1963, %v1964
      %v1966 = vsub.f32 %v1514, %v1965
      %v1967 = vsub.f32 %v1516, %v1965
      %v1968 = vsub.f32 %v1519, %v1965
      %v1969 = vsub.f32 %v1521, %v1965
      %v1970 = vsub.f32 %v1524, %v1965
      %v1971 = vsub.f32 %v1526, %v1965
      %v1972 = vsub.f32 %v1529, %v1965
      %v1973 = vsub.f32 %v1531, %v1965
      %v1974 = vrcp.pop %v1952
      %v1975 = vmul.f32 %v1952, %v1974
      %v1976 = vsub.f32 1.0, %v1975
      %v1977 = vmul.f32 %v1974, %v1976
      %v1978 = vadd.f32 %v1974, %v1977
      %vm1979 = vweird.f32 %v1952
      %vm1980 = vweird.f32 %v1974
      %vm1981 = vmor %vm1979, %vm1980
      %v1982 = vsel %vm1981, %v1974, %v1978
      %v1983 = vand.u32 2147483647, %v1952
      %vm1984 = vcmp.eq.f32.partialorder %v1983, 8.507059e+37
      %v1985 = vand.u32 %v1952, 2147483648
      %v1986 = vor.u32 1.1754944e-38, %v1985
      %v1987 = vsel %vm1984, %v1986, %v1982
      %v1988 = vmul.f32 1.0, %v1987
      %v1989 = vmul.f32 %v1966, %v1988
      %v1990 = vmul.f32 %v1967, %v1988
      %v1991 = vmul.f32 %v1968, %v1988
      %v1992 = vmul.f32 %v1969, %v1988
      %v1993 = vmul.f32 %v1970, %v1988
      %v1994 = vmul.f32 %v1971, %v1988
      %v1995 = vmul.f32 %v1972, %v1988
      %v1996 = vmul.f32 %v1973, %v1988
      %v1997 = vmul.f32 %v1989, 1.442695
      %v1998 = vpow.pop %v1997
      %v1999 = vmul.f32 %v1990, 1.442695
      %v2000 = vpow.pop %v1999
      %v2001 = vmul.f32 %v1991, 1.442695
      %v2002 = vpow.pop %v2001
      %v2003 = vmul.f32 %v1992, 1.442695
      %v2004 = vpow.pop %v2003
      %v2005 = vmul.f32 %v1993, 1.442695
      %v2006 = vpow.pop %v2005
      %v2007 = vmul.f32 %v1994, 1.442695
      %v2008 = vpow.pop %v2007
      %v2009 = vmul.f32 %v1995, 1.442695
      %v2010 = vpow.pop %v2009
      %v2011 = vmul.f32 %v1996, 1.442695
      %v2012 = vpow.pop %v2011
      %v2013 = vadd.f32 %v1998, %v2000
      %v2014 = vadd.f32 %v2013, %v2002
      %v2015 = vadd.f32 %v2014, %v2004
      %v2016 = vadd.f32 %v2015, %v2006
      %v2017 = vadd.f32 %v2016, %v2008
      %v2018 = vadd.f32 %v2017, %v2010
      %v2019 = vadd.f32 %v2018, %v2012
      %v2020 = vrot.slane %v2019, 4
      %v2021 = vadd.f32 %v2019, %v2020
      %v2022 = vrot.slane %v2021, 2
      %v2023 = vadd.f32 %v2021, %v2022
      %v2024 = vrot.slane %v2023, 1
      %v2025 = vadd.f32 %v2023, %v2024
      %v2026 = vrcp.pop %v2025
      %vm2027 = vcmp.eq.f32.partialorder %v1514, %v1718
      %vm2028 = vcmp.eq.f32.partialorder %v1516, %v1720
      %vm2029 = vcmp.eq.f32.partialorder %v1519, %v1722
      %vm2030 = vcmp.eq.f32.partialorder %v1521, %v1724
      %vm2031 = vcmp.eq.f32.partialorder %v1524, %v1726
      %vm2032 = vcmp.eq.f32.partialorder %v1526, %v1728
      %vm2033 = vcmp.eq.f32.partialorder %v1529, %v1730
      %vm2034 = vcmp.eq.f32.partialorder %v1531, %v1732
      %vm2035 = vcmp.eq.f32.partialorder %v1514, %v1965
      %vm2036 = vcmp.eq.f32.partialorder %v1516, %v1965
      %vm2037 = vcmp.eq.f32.partialorder %v1519, %v1965
      %vm2038 = vcmp.eq.f32.partialorder %v1521, %v1965
      %vm2039 = vcmp.eq.f32.partialorder %v1524, %v1965
      %vm2040 = vcmp.eq.f32.partialorder %v1526, %v1965
      %vm2041 = vcmp.eq.f32.partialorder %v1529, %v1965
      %vm2042 = vcmp.eq.f32.partialorder %v1531, %v1965
      %v2043 = vsel %vm2027, %v2026, 0.0
      %v2044 = vsel %vm2028, %v2026, 0.0
      %v2045 = vsel %vm2029, %v2026, 0.0
      %v2046 = vsel %vm2030, %v2026, 0.0
      %v2047 = vsel %vm2031, %v2026, 0.0
      %v2048 = vsel %vm2032, %v2026, 0.0
      %v2049 = vsel %vm2033, %v2026, 0.0
      %v2050 = vsel %vm2034, %v2026, 0.0
      %2051 = vadd.xlane.f32.xlu0 %v2043
      %v2052 = vpop.xlane.xlu0 %2051
      %2053 = vadd.xlane.f32.xlu0 %v2044
      %v2054 = vpop.xlane.xlu0 %2053
      %2055 = vadd.xlane.f32.xlu0 %v2045
      %v2056 = vpop.xlane.xlu0 %2055
      %2057 = vadd.xlane.f32.xlu0 %v2046
      %v2058 = vpop.xlane.xlu0 %2057
      %2059 = vadd.xlane.f32.xlu0 %v2047
      %v2060 = vpop.xlane.xlu0 %2059
      %2061 = vadd.xlane.f32.xlu0 %v2048
      %v2062 = vpop.xlane.xlu0 %2061
      %2063 = vadd.xlane.f32.xlu0 %v2049
      %v2064 = vpop.xlane.xlu0 %2063
      %2065 = vadd.xlane.f32.xlu0 %v2050
      %v2066 = vpop.xlane.xlu0 %2065
      %v2067 = vmul.f32 %v1901, %v2052
      %v2068 = vmul.f32 %v1902, %v2054
      %v2069 = vmul.f32 %v1903, %v2056
      %v2070 = vmul.f32 %v1904, %v2058
      %v2071 = vmul.f32 %v1905, %v2060
      %v2072 = vmul.f32 %v1906, %v2062
      %v2073 = vmul.f32 %v1907, %v2064
      %v2074 = vmul.f32 %v1908, %v2066
      %2076 = vset.pattern.permute.xlu0 0
      %2077 = vperm.xlu0 %2076, %v297
      %v2078 = vpop.permute.xlu0 %2077
      %2081 = vset.pattern.permute.xlu0 0
      %2082 = vperm.xlu0 %2081, %v298
      %v2083 = vpop.permute.xlu0 %2082
      %2086 = vset.pattern.permute.xlu0 0
      %2087 = vperm.xlu0 %2086, %v299
      %v2088 = vpop.permute.xlu0 %2087
      %2091 = vset.pattern.permute.xlu0 0
      %2092 = vperm.xlu0 %2091, %v300
      %v2093 = vpop.permute.xlu0 %2092
      %2096 = vset.pattern.permute.xlu0 0
      %2097 = vperm.xlu0 %2096, %v301
      %v2098 = vpop.permute.xlu0 %2097
      %2101 = vset.pattern.permute.xlu0 0
      %2102 = vperm.xlu0 %2101, %v302
      %v2103 = vpop.permute.xlu0 %2102
      %2106 = vset.pattern.permute.xlu0 0
      %2107 = vperm.xlu0 %2106, %v303
      %v2108 = vpop.permute.xlu0 %2107
      %2111 = vset.pattern.permute.xlu0 0
      %2112 = vperm.xlu0 %2111, %v304
      %v2113 = vpop.permute.xlu0 %2112
      %v2115 = vsel %vm2035, %v2078, 0.0
      %v2116 = vsel %vm2036, %v2083, 0.0
      %v2117 = vsel %vm2037, %v2088, 0.0
      %v2118 = vsel %vm2038, %v2093, 0.0
      %v2119 = vsel %vm2039, %v2098, 0.0
      %v2120 = vsel %vm2040, %v2103, 0.0
      %v2121 = vsel %vm2041, %v2108, 0.0
      %v2122 = vsel %vm2042, %v2113, 0.0
      %v2123 = vadd.f32 %v2115, %v2116
      %v2124 = vadd.f32 %v2123, %v2117
      %v2125 = vadd.f32 %v2124, %v2118
      %v2126 = vadd.f32 %v2125, %v2119
      %v2127 = vadd.f32 %v2126, %v2120
      %v2128 = vadd.f32 %v2127, %v2121
      %v2129 = vadd.f32 %v2128, %v2122
      %v2130 = vrot.slane %v2129, 4
      %v2131 = vadd.f32 %v2129, %v2130
      %v2132 = vrot.slane %v2131, 2
      %v2133 = vadd.f32 %v2131, %v2132
      %v2134 = vrot.slane %v2133, 1
      %v2135 = vadd.f32 %v2133, %v2134
      %v2136 = vsel %vm2027, %v2135, 0.0
      %v2137 = vsel %vm2028, %v2135, 0.0
      %v2138 = vsel %vm2029, %v2135, 0.0
      %v2139 = vsel %vm2030, %v2135, 0.0
      %v2140 = vsel %vm2031, %v2135, 0.0
      %v2141 = vsel %vm2032, %v2135, 0.0
      %v2142 = vsel %vm2033, %v2135, 0.0
      %v2143 = vsel %vm2034, %v2135, 0.0
      %2144 = vadd.xlane.f32.xlu0 %v2136
      %v2145 = vpop.xlane.xlu0 %2144
      %2146 = vadd.xlane.f32.xlu0 %v2137
      %v2147 = vpop.xlane.xlu0 %2146
      %2148 = vadd.xlane.f32.xlu0 %v2138
      %v2149 = vpop.xlane.xlu0 %2148
      %2150 = vadd.xlane.f32.xlu0 %v2139
      %v2151 = vpop.xlane.xlu0 %2150
      %2152 = vadd.xlane.f32.xlu0 %v2140
      %v2153 = vpop.xlane.xlu0 %2152
      %2154 = vadd.xlane.f32.xlu0 %v2141
      %v2155 = vpop.xlane.xlu0 %2154
      %2156 = vadd.xlane.f32.xlu0 %v2142
      %v2157 = vpop.xlane.xlu0 %2156
      %2158 = vadd.xlane.f32.xlu0 %v2143
      %v2159 = vpop.xlane.xlu0 %2158
      %vm2160 = vcmp.eq.f32.partialorder %v297, %v2145
      %vm2161 = vcmp.eq.f32.partialorder %v298, %v2147
      %vm2162 = vcmp.eq.f32.partialorder %v299, %v2149
      %vm2163 = vcmp.eq.f32.partialorder %v300, %v2151
      %vm2164 = vcmp.eq.f32.partialorder %v301, %v2153
      %vm2165 = vcmp.eq.f32.partialorder %v302, %v2155
      %vm2166 = vcmp.eq.f32.partialorder %v303, %v2157
      %vm2167 = vcmp.eq.f32.partialorder %v304, %v2159
      %vm2168 = vcmp.ne.f32.partialorder %v297, 255.0
      %vm2169 = vcmp.ne.f32.partialorder %v298, 255.0
      %vm2170 = vcmp.ne.f32.partialorder %v299, 255.0
      %vm2171 = vcmp.ne.f32.partialorder %v300, 255.0
      %vm2172 = vcmp.ne.f32.partialorder %v301, 255.0
      %vm2173 = vcmp.ne.f32.partialorder %v302, 255.0
      %vm2174 = vcmp.ne.f32.partialorder %v303, 255.0
      %vm2175 = vcmp.ne.f32.partialorder %v304, 255.0
      %vm2176 = vmand %vm2160, %vm2168
      %vm2177 = vmand %vm2161, %vm2169
      %vm2178 = vmand %vm2162, %vm2170
      %vm2179 = vmand %vm2163, %vm2171
      %vm2180 = vmand %vm2164, %vm2172
      %vm2181 = vmand %vm2165, %vm2173
      %vm2182 = vmand %vm2166, %vm2174
      %vm2183 = vmand %vm2167, %vm2175
      %v2184 = vlog2.pop %v2067
      %v2185 = vmul.f32 %v2184, 0.6931472
      %v2186 = vlog2.pop %v2068
      %v2187 = vmul.f32 %v2186, 0.6931472
      %v2188 = vlog2.pop %v2069
      %v2189 = vmul.f32 %v2188, 0.6931472
      %v2190 = vlog2.pop %v2070
      %v2191 = vmul.f32 %v2190, 0.6931472
      %v2192 = vlog2.pop %v2071
      %v2193 = vmul.f32 %v2192, 0.6931472
      %v2194 = vlog2.pop %v2072
      %v2195 = vmul.f32 %v2194, 0.6931472
      %v2196 = vlog2.pop %v2073
      %v2197 = vmul.f32 %v2196, 0.6931472
      %v2198 = vlog2.pop %v2074
      %v2199 = vmul.f32 %v2198, 0.6931472
      %v2200 = vmax.f32 %v2185, -100.0
      %v2201 = vmax.f32 %v2187, -100.0
      %v2202 = vmax.f32 %v2189, -100.0
      %v2203 = vmax.f32 %v2191, -100.0
      %v2204 = vmax.f32 %v2193, -100.0
      %v2205 = vmax.f32 %v2195, -100.0
      %v2206 = vmax.f32 %v2197, -100.0
      %v2207 = vmax.f32 %v2199, -100.0
      %v2208 = vsub.f32 0.0, %v2200
      %v2209 = vsub.f32 0.0, %v2201
      %v2210 = vsub.f32 0.0, %v2202
      %v2211 = vsub.f32 0.0, %v2203
      %v2212 = vsub.f32 0.0, %v2204
      %v2213 = vsub.f32 0.0, %v2205
      %v2214 = vsub.f32 0.0, %v2206
      %v2215 = vsub.f32 0.0, %v2207
      %v2216 = vsel %vm2176, %v2208, 0.0
      %v2217 = vsel %vm2177, %v2209, 0.0
      %v2218 = vsel %vm2178, %v2210, 0.0
      %v2219 = vsel %vm2179, %v2211, 0.0
      %v2220 = vsel %vm2180, %v2212, 0.0
      %v2221 = vsel %vm2181, %v2213, 0.0
      %v2222 = vsel %vm2182, %v2214, 0.0
      %v2223 = vsel %vm2183, %v2215, 0.0
      %vm2224 = vcmask 7168
      %v2225 = vsel %vm2224, %v2216, 0.0
      %v2226 = vsel %vm2224, %v2217, 0.0
      %v2227 = vadd.f32 %v2225, %v2226
      %v2228 = vsel %vm2224, %v2218, 0.0
      %v2229 = vadd.f32 %v2227, %v2228
      %v2230 = vsel %vm2224, %v2219, 0.0
      %v2231 = vadd.f32 %v2229, %v2230
      %v2232 = vsel %vm2224, %v2220, 0.0
      %v2233 = vadd.f32 %v2231, %v2232
      %v2234 = vsel %vm2224, %v2221, 0.0
      %v2235 = vadd.f32 %v2233, %v2234
      %v2236 = vsel %vm2224, %v2222, 0.0
      %v2237 = vadd.f32 %v2235, %v2236
      %v2238 = vsel %vm2224, %v2223, 0.0
      %v2239 = vadd.f32 %v2237, %v2238
      %v2240 = vrot.slane %v2239, 4
      %v2241 = vadd.f32 %v2239, %v2240
      %v2242 = vrot.slane %v2241, 2
      %v2243 = vadd.f32 %v2241, %v2242
      %v2244 = vrot.slane %v2243, 1
      %v2245 = vadd.f32 %v2243, %v2244
      %vm2246 = vcmask 0
      %2247 = vst.msk [vmem:[%s283] sm:$0x1] %vm2246, %v2245
      %v2248 = vsel %vm2176, 1, 0
      %v2249 = vsel %vm2177, 1, 0
      %v2250 = vsel %vm2178, 1, 0
      %v2251 = vsel %vm2179, 1, 0
      %v2252 = vsel %vm2180, 1, 0
      %v2253 = vsel %vm2181, 1, 0
      %v2254 = vsel %vm2182, 1, 0
      %v2255 = vsel %vm2183, 1, 0
      %v2256 = vcvt.s32.f32 %v2248
      %v2257 = vcvt.s32.f32 %v2249
      %v2258 = vcvt.s32.f32 %v2250
      %v2259 = vcvt.s32.f32 %v2251
      %v2260 = vcvt.s32.f32 %v2252
      %v2261 = vcvt.s32.f32 %v2253
      %v2262 = vcvt.s32.f32 %v2254
      %v2263 = vcvt.s32.f32 %v2255
      %v2264 = vsel %vm2224, %v2256, 0.0
      %v2265 = vsel %vm2224, %v2257, 0.0
      %v2266 = vadd.f32 %v2264, %v2265
      %v2267 = vsel %vm2224, %v2258, 0.0
      %v2268 = vadd.f32 %v2266, %v2267
      %v2269 = vsel %vm2224, %v2259, 0.0
      %v2270 = vadd.f32 %v2268, %v2269
      %v2271 = vsel %vm2224, %v2260, 0.0
      %v2272 = vadd.f32 %v2270, %v2271
      %v2273 = vsel %vm2224, %v2261, 0.0
      %v2274 = vadd.f32 %v2272, %v2273
      %v2275 = vsel %vm2224, %v2262, 0.0
      %v2276 = vadd.f32 %v2274, %v2275
      %v2277 = vsel %vm2224, %v2263, 0.0
      %v2278 = vadd.f32 %v2276, %v2277
      %v2279 = vrot.slane %v2278, 4
      %v2280 = vadd.f32 %v2278, %v2279
      %v2281 = vrot.slane %v2280, 2
      %v2282 = vadd.f32 %v2280, %v2281
      %v2283 = vrot.slane %v2282, 1
      %v2284 = vadd.f32 %v2282, %v2283
      %2285 = vst.msk [vmem:[%s286] sm:$0x1] %vm2246, %v2284
      %p2286 = scmp.lt.s32.totalorder %s17, 1
      %s2287 = scalar_select %p2286, %s17, 1
      %s2288 = scalar_lea.vmem %s4, %s2287
      %p2289 = scmp.lt.s32.totalorder %s17, 1
      %s2290 = scalar_select %p2289, %s17, 1
      %s2291 = scalar_lea.vmem %s5, %s2290
      // Predicated region
      $region37: #{tpu_custom_call.1} parent=35 // pred_check
        %p2292 = pneg %p139
      $region38: #{tpu_custom_call.1} parent=35 // pred_check_branch
        %2294 = sbr.rel (%p2292) target = $region40
      $region39: #{tpu_custom_call.1} parent=35 // pred_region
        _
      $region40: #{tpu_custom_call.1} parent=35 // pred_fallthru
        _
      // Predicated region
      $region41: #{tpu_custom_call.1} parent=35 // pred_check
        %p2295 = pneg %p165
      $region42: #{tpu_custom_call.1} parent=35 // pred_check_branch
        %2297 = sbr.rel (%p2295) target = $region44
      $region43: #{tpu_custom_call.1} parent=35 // pred_region
        _
      $region44: #{tpu_custom_call.1} parent=35 // pred_fallthru
        _
    $region36: #{tpu_custom_call.1} parent=5 // pred_fallthru
      _
    %p2298 = scmp.le.s32.totalorder 2, %s12
    // Predicated region
    $region45: #{tpu_custom_call.1} parent=5 // pred_check
      %p2299 = pneg %p2298
    $region46: #{tpu_custom_call.1} parent=5 // pred_check_branch
      %2301 = sbr.rel (%p2299) target = $region48
    $region47: #{tpu_custom_call.1} parent=5 // pred_region
      %s2302 = ssub.s32 %s12, 2
      // Predicated region
      $region49: #{tpu_custom_call.1} parent=47 // pred_check
        %p2303 = pneg %p145
      $region50: #{tpu_custom_call.1} parent=47 // pred_check_branch
        %2305 = sbr.rel (%p2303) target = $region52
      $region51: #{tpu_custom_call.1} parent=47 // pred_region
        %p2306 = scmp.lt.s32.totalorder %s18, 1
        %s2307 = scalar_select %p2306, %s18, 1
        %s2308 = scalar_lea.vmem %s4, %s2307
      $region52: #{tpu_custom_call.1} parent=47 // pred_fallthru
        _
      // Predicated region
      $region53: #{tpu_custom_call.1} parent=47 // pred_check
        %p2309 = pneg %p171
      $region54: #{tpu_custom_call.1} parent=47 // pred_check_branch
        %2311 = sbr.rel (%p2309) target = $region56
      $region55: #{tpu_custom_call.1} parent=47 // pred_region
        %p2312 = scmp.lt.s32.totalorder %s18, 1
        %s2313 = scalar_select %p2312, %s18, 1
        %s2314 = scalar_lea.vmem %s5, %s2313
      $region56: #{tpu_custom_call.1} parent=47 // pred_fallthru
        _
    $region48: #{tpu_custom_call.1} parent=5 // pred_fallthru
      _
  $region6: #{tpu_custom_call.1} parent=0 // loop_footer
    %s16 = sadd.s32 1, %s12
  $region7: #{tpu_custom_call.1} parent=0 // loop_footer_branch
    %11 = sbr.rel target = $region3
  $region8: #{tpu_custom_call.1} parent=0 // loop_exit
    _

</llo_original>
